<compile_context>
chip_gen: v7x
topology: tpu7x:2x2x1
jax: 0.10.0
libtpu: 0.0.40
codegen_flags: <defaults>
</compile_context>

<pallas_src>
import functools

import jax
import jax.numpy as jnp
from jax import lax
from jax.experimental import pallas as pl
from jax.experimental.pallas import tpu as pltpu

Nt_num = 16
F_IN = 2 * Nt_num          # 32
H_M = 32                   # mlp_m hidden
F_MSG = 64                 # mlp_m output
H_U = 32                   # mlp_u hidden
F_OUT = 2 * Nt_num         # 32
LEAKY_SLOPE = 0.01         # PyTorch LeakyReLU default
NUM_ROUNDS = 3


def _leaky(v):
    return jnp.where(v >= 0, v, LEAKY_SLOPE * v)


# ----------------------------------------------------------------------------
# Fused kernel: 3 x (shared HeteroGConv over both edge types) + bf_output head.
#   x_ref   : [N, 32]  stacked node features, rows [0:ns) = served, [ns:N) = interfered
#   adj_ref : [N, N]   block adjacency in stacked (dst x src) layout:
#                        [[0, adj_i2s], [adj_s2i, 0]]
#   out_ref : [ns, 32] beamforming matrix (served nodes only)
# ----------------------------------------------------------------------------
def fdgnn_kernel(ns,
                 x_ref, adj_ref,
                 wm1_ref, bm1_ref, wm2_ref, bm2_ref,
                 wu1a_ref, wu1b_ref, bu1_ref, wu2_ref, bu2_ref,
                 wbf_ref, bbf_ref,
                 out_ref):
    # Load weights once; they stay resident for the whole fused forward.
    wm1, bm1 = wm1_ref[...], bm1_ref[...]
    wm2, bm2 = wm2_ref[...], bm2_ref[...]
    wu1a, wu1b, bu1 = wu1a_ref[...], wu1b_ref[...], bu1_ref[...]
    wu2, bu2 = wu2_ref[...], bu2_ref[...]

    adj = adj_ref[...]
    x = x_ref[...]

    # 3 shared HeteroGConv applications, statically unrolled; both edge
    # directions are handled at once via the stacked node matrix + block adj,
    # so each round is 5 matmuls on [N, *] instead of 10 on [Ns, *]/[Ni, *].
    for _ in range(NUM_ROUNDS):
        # message MLP (mlp_m) on all source nodes (params shared across types)
        h = _leaky(jnp.dot(x, wm1, preferred_element_type=jnp.float32) + bm1)
        msg = _leaky(jnp.dot(h, wm2, preferred_element_type=jnp.float32) + bm2)
        # sum-aggregation over incoming edges for both dst types at once
        aggr = jnp.dot(adj, msg, preferred_element_type=jnp.float32)
        # update MLP (mlp_u) on cat([x_dst, aggr]) == x @ Wu1a + aggr @ Wu1b
        u = _leaky(jnp.dot(x, wu1a, preferred_element_type=jnp.float32)
                   + jnp.dot(aggr, wu1b, preferred_element_type=jnp.float32)
                   + bu1)
        x = _leaky(jnp.dot(u, wu2, preferred_element_type=jnp.float32) + bu2)

    # bf_output head on the 'served' rows: Linear -> Tanh -> PowerConstraint
    xs = x[:ns, :]                                   # static slice (ns is compile-time)
    y = jnp.tanh(jnp.dot(xs, wbf_ref[...],
                         preferred_element_type=jnp.float32) + bbf_ref[...])
    # global Frobenius-norm constraint: scale by 1/||Y|| iff ||Y|| > 1.
    # (norm > 1 <=> sum(y^2) > 1; rsqrt goes to the EUP slot, exact f32 kept)
    sumsq = jnp.sum(y * y)
    scale = jnp.where(sumsq > 1.0, lax.rsqrt(sumsq), 1.0)
    out_ref[...] = y * scale


@jax.jit
def fdgnn_forward(x_served, x_interfered, adj_s2i, adj_i2s, params):
    """adj_s2i: [Ni, Ns] dense (dst x src) for edge type (served -> interfered)
       adj_i2s: [Ns, Ni] dense (dst x src) for edge type (interfered -> served)"""
    ns, ni = x_served.shape[0], x_interfered.shape[0]
    n = ns + ni

    # Stack node features and build the block adjacency once (fused by XLA).
    x_all = jnp.concatenate([x_served, x_interfered], axis=0)
    adj = jnp.zeros((n, n), jnp.float32)
    adj = adj.at[:ns, ns:].set(adj_i2s)   # served rows aggregate interfered srcs
    adj = adj.at[ns:, :ns].set(adj_s2i)   # interfered rows aggregate served srcs

    args = (x_all, adj,
            params["wm1"], params["bm1"], params["wm2"], params["bm2"],
            params["wu1a"], params["wu1b"], params["bu1"],
            params["wu2"], params["bu2"],
            params["wbf"], params["bbf"])

    return pl.pallas_call(
        functools.partial(fdgnn_kernel, ns),
        out_shape=jax.ShapeDtypeStruct((ns, F_OUT), jnp.float32),
        in_specs=[pl.BlockSpec(memory_space=pltpu.MemorySpace.VMEM)] * len(args),
        out_specs=pl.BlockSpec(memory_space=pltpu.MemorySpace.VMEM),
    )(*args)


# ----------------------------------------------------------------------------
# Parameter init (PyTorch nn.Linear-style uniform init, weights pre-transposed
# to [in, out] so y = x @ W + b).
# ----------------------------------------------------------------------------
def init_params(key):
    def linear(key, fan_in, fan_out):
        kw, kb = jax.random.split(key)
        bound = 1.0 / jnp.sqrt(jnp.float32(fan_in))
        w = jax.random.uniform(kw, (fan_in, fan_out), jnp.float32, -bound, bound)
        b = jax.random.uniform(kb, (1, fan_out), jnp.float32, -bound, bound)
        return w, b

    ks = jax.random.split(key, 6)
    wm1, bm1 = linear(ks[0], F_IN, H_M)              # mlp_m layer 1: 32 -> 32
    wm2, bm2 = linear(ks[1], H_M, F_MSG)             # mlp_m layer 2: 32 -> 64
    wu1, bu1 = linear(ks[2], F_OUT + F_MSG, H_U)     # mlp_u layer 1: 96 -> 32
    wu2, bu2 = linear(ks[3], H_U, F_OUT)             # mlp_u layer 2: 32 -> 32
    wbf, bbf = linear(ks[4], F_OUT, F_OUT)           # bf_output linear: 32 -> 32
    return {
        "wm1": wm1, "bm1": bm1, "wm2": wm2, "bm2": bm2,
        "wu1a": wu1[:F_OUT, :],    # multiplies x_dst   (first 32 rows of cat)
        "wu1b": wu1[F_OUT:, :],    # multiplies aggr    (last 64 rows of cat)
        "bu1": bu1, "wu2": wu2, "bu2": bu2,
        "wbf": wbf, "bbf": bbf,
    }


# Pure-JAX reference (mirrors the PyTorch forward) for a correctness check.
def fdgnn_reference(x_s, x_i, adj_s2i, adj_i2s, p):
    def mlp_m(x):
        return _leaky(_leaky(x @ p["wm1"] + p["bm1"]) @ p["wm2"] + p["bm2"])

    def mlp_u(x_dst, aggr):
        u = _leaky(x_dst @ p["wu1a"] + aggr @ p["wu1b"] + p["bu1"])
        return _leaky(u @ p["wu2"] + p["bu2"])

    xs, xi = x_s, x_i
    for _ in range(NUM_ROUNDS):
        new_i = mlp_u(xi, adj_s2i @ mlp_m(xs))   # dst = interfered
        new_s = mlp_u(xs, adj_i2s @ mlp_m(xi))   # dst = served
        xs, xi = new_s, new_i
    y = jnp.tanh(xs @ p["wbf"] + p["bbf"])
    n = jnp.sqrt(jnp.sum(y * y))
    return jnp.where(n > 1.0, y / n, y)


if __name__ == "__main__":
    key = jax.random.PRNGKey(0)
    k_par, k_xs, k_xi, k_a1, k_a2 = jax.random.split(key, 5)

    N_served = 8
    N_interfered = 16

    params = init_params(k_par)
    x_served = jax.random.normal(k_xs, (N_served, F_IN), jnp.float32)
    x_interfered = jax.random.normal(k_xi, (N_interfered, F_IN), jnp.float32)

    # Deterministic random bipartite edge sets, expressed as dense (dst x src)
    # adjacency matrices so the PyG scatter-sum becomes a matmul.
    adj_s2i = jax.random.bernoulli(k_a1, 0.5, (N_interfered, N_served)).astype(jnp.float32)
    adj_i2s = jax.random.bernoulli(k_a2, 0.5, (N_served, N_interfered)).astype(jnp.float32)

    bfm = fdgnn_forward(x_served, x_interfered, adj_s2i, adj_i2s, params)
    bfm = jax.block_until_ready(bfm)

    ref = fdgnn_reference(x_served, x_interfered, adj_s2i, adj_i2s, params)
    assert bfm.shape == (N_served, F_OUT) and bfm.dtype == jnp.float32
    assert jnp.allclose(bfm, ref, rtol=1e-5, atol=1e-5), "mismatch vs JAX reference"
    print("KERNEL_OK")
</pallas_src>

<mosaic_0001>
module attributes {stable_mosaic.version = 11 : i64} {
  func.func @fdgnn_kernel(%arg0: memref<24x32xf32, #tpu.memory_space<vmem>>, %arg1: memref<24x24xf32, #tpu.memory_space<vmem>>, %arg2: memref<32x32xf32, #tpu.memory_space<vmem>>, %arg3: memref<1x32xf32, #tpu.memory_space<vmem>>, %arg4: memref<32x64xf32, #tpu.memory_space<vmem>>, %arg5: memref<1x64xf32, #tpu.memory_space<vmem>>, %arg6: memref<32x32xf32, #tpu.memory_space<vmem>>, %arg7: memref<64x32xf32, #tpu.memory_space<vmem>>, %arg8: memref<1x32xf32, #tpu.memory_space<vmem>>, %arg9: memref<32x32xf32, #tpu.memory_space<vmem>>, %arg10: memref<1x32xf32, #tpu.memory_space<vmem>>, %arg11: memref<32x32xf32, #tpu.memory_space<vmem>>, %arg12: memref<1x32xf32, #tpu.memory_space<vmem>>, %arg13: memref<8x32xf32, #tpu.memory_space<vmem>>) attributes {dimension_semantics = [], scalar_prefetch = 0 : i64, scratch_operands = 0 : i64, tpu.core_type = #tpu.core_type<tc>} {
    %c0 = arith.constant 0 : index
    %c0_0 = arith.constant 0 : index
    %0 = vector.load %arg2[%c0, %c0_0] : memref<32x32xf32, #tpu.memory_space<vmem>>, vector<32x32xf32>
    %c0_1 = arith.constant 0 : index
    %c0_2 = arith.constant 0 : index
    %1 = vector.load %arg3[%c0_1, %c0_2] : memref<1x32xf32, #tpu.memory_space<vmem>>, vector<1x32xf32>
    %c0_3 = arith.constant 0 : index
    %c0_4 = arith.constant 0 : index
    %2 = vector.load %arg4[%c0_3, %c0_4] : memref<32x64xf32, #tpu.memory_space<vmem>>, vector<32x64xf32>
    %c0_5 = arith.constant 0 : index
    %c0_6 = arith.constant 0 : index
    %3 = vector.load %arg5[%c0_5, %c0_6] : memref<1x64xf32, #tpu.memory_space<vmem>>, vector<1x64xf32>
    %c0_7 = arith.constant 0 : index
    %c0_8 = arith.constant 0 : index
    %4 = vector.load %arg6[%c0_7, %c0_8] : memref<32x32xf32, #tpu.memory_space<vmem>>, vector<32x32xf32>
    %c0_9 = arith.constant 0 : index
    %c0_10 = arith.constant 0 : index
    %5 = vector.load %arg7[%c0_9, %c0_10] : memref<64x32xf32, #tpu.memory_space<vmem>>, vector<64x32xf32>
    %c0_11 = arith.constant 0 : index
    %c0_12 = arith.constant 0 : index
    %6 = vector.load %arg8[%c0_11, %c0_12] : memref<1x32xf32, #tpu.memory_space<vmem>>, vector<1x32xf32>
    %c0_13 = arith.constant 0 : index
    %c0_14 = arith.constant 0 : index
    %7 = vector.load %arg9[%c0_13, %c0_14] : memref<32x32xf32, #tpu.memory_space<vmem>>, vector<32x32xf32>
    %c0_15 = arith.constant 0 : index
    %c0_16 = arith.constant 0 : index
    %8 = vector.load %arg10[%c0_15, %c0_16] : memref<1x32xf32, #tpu.memory_space<vmem>>, vector<1x32xf32>
    %c0_17 = arith.constant 0 : index
    %c0_18 = arith.constant 0 : index
    %9 = vector.load %arg1[%c0_17, %c0_18] : memref<24x24xf32, #tpu.memory_space<vmem>>, vector<24x24xf32>
    %c0_19 = arith.constant 0 : index
    %c0_20 = arith.constant 0 : index
    %10 = vector.load %arg0[%c0_19, %c0_20] : memref<24x32xf32, #tpu.memory_space<vmem>>, vector<24x32xf32>
    %cst = arith.constant dense<0.000000e+00> : vector<24x32xf32>
    %11 = tpu.matmul %10, %0, %cst {dimension_numbers = #tpu.dot_dimension_numbers<[1], [0], [0], [1], [0, 0, 1, 1], [], []>} : vector<24x32xf32>, vector<32x32xf32>, vector<24x32xf32> -> vector<24x32xf32>
    %12 = vector.broadcast %1 : vector<1x32xf32> to vector<24x32xf32>
    %13 = arith.addf %11, %12 : vector<24x32xf32>
    %cst_21 = arith.constant 0.000000e+00 : f32
    %14 = vector.broadcast %cst_21 : f32 to vector<24x32xf32>
    %15 = arith.cmpf oge, %13, %14 : vector<24x32xf32>
    %cst_22 = arith.constant 0.00999999977 : f32
    %16 = vector.broadcast %cst_22 : f32 to vector<24x32xf32>
    %17 = arith.mulf %16, %13 : vector<24x32xf32>
    %18 = arith.select %15, %13, %17 : vector<24x32xi1>, vector<24x32xf32>
    %cst_23 = arith.constant dense<0.000000e+00> : vector<24x64xf32>
    %19 = tpu.matmul %18, %2, %cst_23 {dimension_numbers = #tpu.dot_dimension_numbers<[1], [0], [0], [1], [0, 0, 1, 1], [], []>} : vector<24x32xf32>, vector<32x64xf32>, vector<24x64xf32> -> vector<24x64xf32>
    %20 = vector.broadcast %3 : vector<1x64xf32> to vector<24x64xf32>
    %21 = arith.addf %19, %20 : vector<24x64xf32>
    %cst_24 = arith.constant 0.000000e+00 : f32
    %22 = vector.broadcast %cst_24 : f32 to vector<24x64xf32>
    %23 = arith.cmpf oge, %21, %22 : vector<24x64xf32>
    %cst_25 = arith.constant 0.00999999977 : f32
    %24 = vector.broadcast %cst_25 : f32 to vector<24x64xf32>
    %25 = arith.mulf %24, %21 : vector<24x64xf32>
    %26 = arith.select %23, %21, %25 : vector<24x64xi1>, vector<24x64xf32>
    %cst_26 = arith.constant dense<0.000000e+00> : vector<24x64xf32>
    %27 = tpu.matmul %9, %26, %cst_26 {dimension_numbers = #tpu.dot_dimension_numbers<[1], [0], [0], [1], [0, 0, 1, 1], [], []>} : vector<24x24xf32>, vector<24x64xf32>, vector<24x64xf32> -> vector<24x64xf32>
    %cst_27 = arith.constant dense<0.000000e+00> : vector<24x32xf32>
    %28 = tpu.matmul %10, %4, %cst_27 {dimension_numbers = #tpu.dot_dimension_numbers<[1], [0], [0], [1], [0, 0, 1, 1], [], []>} : vector<24x32xf32>, vector<32x32xf32>, vector<24x32xf32> -> vector<24x32xf32>
    %cst_28 = arith.constant dense<0.000000e+00> : vector<24x32xf32>
    %29 = tpu.matmul %27, %5, %cst_28 {dimension_numbers = #tpu.dot_dimension_numbers<[1], [0], [0], [1], [0, 0, 1, 1], [], []>} : vector<24x64xf32>, vector<64x32xf32>, vector<24x32xf32> -> vector<24x32xf32>
    %30 = arith.addf %28, %29 : vector<24x32xf32>
    %31 = vector.broadcast %6 : vector<1x32xf32> to vector<24x32xf32>
    %32 = arith.addf %30, %31 : vector<24x32xf32>
    %cst_29 = arith.constant 0.000000e+00 : f32
    %33 = vector.broadcast %cst_29 : f32 to vector<24x32xf32>
    %34 = arith.cmpf oge, %32, %33 : vector<24x32xf32>
    %cst_30 = arith.constant 0.00999999977 : f32
    %35 = vector.broadcast %cst_30 : f32 to vector<24x32xf32>
    %36 = arith.mulf %35, %32 : vector<24x32xf32>
    %37 = arith.select %34, %32, %36 : vector<24x32xi1>, vector<24x32xf32>
    %cst_31 = arith.constant dense<0.000000e+00> : vector<24x32xf32>
    %38 = tpu.matmul %37, %7, %cst_31 {dimension_numbers = #tpu.dot_dimension_numbers<[1], [0], [0], [1], [0, 0, 1, 1], [], []>} : vector<24x32xf32>, vector<32x32xf32>, vector<24x32xf32> -> vector<24x32xf32>
    %39 = vector.broadcast %8 : vector<1x32xf32> to vector<24x32xf32>
    %40 = arith.addf %38, %39 : vector<24x32xf32>
    %cst_32 = arith.constant 0.000000e+00 : f32
    %41 = vector.broadcast %cst_32 : f32 to vector<24x32xf32>
    %42 = arith.cmpf oge, %40, %41 : vector<24x32xf32>
    %cst_33 = arith.constant 0.00999999977 : f32
    %43 = vector.broadcast %cst_33 : f32 to vector<24x32xf32>
    %44 = arith.mulf %43, %40 : vector<24x32xf32>
    %45 = arith.select %42, %40, %44 : vector<24x32xi1>, vector<24x32xf32>
    %cst_34 = arith.constant dense<0.000000e+00> : vector<24x32xf32>
    %46 = tpu.matmul %45, %0, %cst_34 {dimension_numbers = #tpu.dot_dimension_numbers<[1], [0], [0], [1], [0, 0, 1, 1], [], []>} : vector<24x32xf32>, vector<32x32xf32>, vector<24x32xf32> -> vector<24x32xf32>
    %47 = vector.broadcast %1 : vector<1x32xf32> to vector<24x32xf32>
    %48 = arith.addf %46, %47 : vector<24x32xf32>
    %cst_35 = arith.constant 0.000000e+00 : f32
    %49 = vector.broadcast %cst_35 : f32 to vector<24x32xf32>
    %50 = arith.cmpf oge, %48, %49 : vector<24x32xf32>
    %cst_36 = arith.constant 0.00999999977 : f32
    %51 = vector.broadcast %cst_36 : f32 to vector<24x32xf32>
    %52 = arith.mulf %51, %48 : vector<24x32xf32>
    %53 = arith.select %50, %48, %52 : vector<24x32xi1>, vector<24x32xf32>
    %cst_37 = arith.constant dense<0.000000e+00> : vector<24x64xf32>
    %54 = tpu.matmul %53, %2, %cst_37 {dimension_numbers = #tpu.dot_dimension_numbers<[1], [0], [0], [1], [0, 0, 1, 1], [], []>} : vector<24x32xf32>, vector<32x64xf32>, vector<24x64xf32> -> vector<24x64xf32>
    %55 = vector.broadcast %3 : vector<1x64xf32> to vector<24x64xf32>
    %56 = arith.addf %54, %55 : vector<24x64xf32>
    %cst_38 = arith.constant 0.000000e+00 : f32
    %57 = vector.broadcast %cst_38 : f32 to vector<24x64xf32>
    %58 = arith.cmpf oge, %56, %57 : vector<24x64xf32>
    %cst_39 = arith.constant 0.00999999977 : f32
    %59 = vector.broadcast %cst_39 : f32 to vector<24x64xf32>
    %60 = arith.mulf %59, %56 : vector<24x64xf32>
    %61 = arith.select %58, %56, %60 : vector<24x64xi1>, vector<24x64xf32>
    %cst_40 = arith.constant dense<0.000000e+00> : vector<24x64xf32>
    %62 = tpu.matmul %9, %61, %cst_40 {dimension_numbers = #tpu.dot_dimension_numbers<[1], [0], [0], [1], [0, 0, 1, 1], [], []>} : vector<24x24xf32>, vector<24x64xf32>, vector<24x64xf32> -> vector<24x64xf32>
    %cst_41 = arith.constant dense<0.000000e+00> : vector<24x32xf32>
    %63 = tpu.matmul %45, %4, %cst_41 {dimension_numbers = #tpu.dot_dimension_numbers<[1], [0], [0], [1], [0, 0, 1, 1], [], []>} : vector<24x32xf32>, vector<32x32xf32>, vector<24x32xf32> -> vector<24x32xf32>
    %cst_42 = arith.constant dense<0.000000e+00> : vector<24x32xf32>
    %64 = tpu.matmul %62, %5, %cst_42 {dimension_numbers = #tpu.dot_dimension_numbers<[1], [0], [0], [1], [0, 0, 1, 1], [], []>} : vector<24x64xf32>, vector<64x32xf32>, vector<24x32xf32> -> vector<24x32xf32>
    %65 = arith.addf %63, %64 : vector<24x32xf32>
    %66 = vector.broadcast %6 : vector<1x32xf32> to vector<24x32xf32>
    %67 = arith.addf %65, %66 : vector<24x32xf32>
    %cst_43 = arith.constant 0.000000e+00 : f32
    %68 = vector.broadcast %cst_43 : f32 to vector<24x32xf32>
    %69 = arith.cmpf oge, %67, %68 : vector<24x32xf32>
    %cst_44 = arith.constant 0.00999999977 : f32
    %70 = vector.broadcast %cst_44 : f32 to vector<24x32xf32>
    %71 = arith.mulf %70, %67 : vector<24x32xf32>
    %72 = arith.select %69, %67, %71 : vector<24x32xi1>, vector<24x32xf32>
    %cst_45 = arith.constant dense<0.000000e+00> : vector<24x32xf32>
    %73 = tpu.matmul %72, %7, %cst_45 {dimension_numbers = #tpu.dot_dimension_numbers<[1], [0], [0], [1], [0, 0, 1, 1], [], []>} : vector<24x32xf32>, vector<32x32xf32>, vector<24x32xf32> -> vector<24x32xf32>
    %74 = vector.broadcast %8 : vector<1x32xf32> to vector<24x32xf32>
    %75 = arith.addf %73, %74 : vector<24x32xf32>
    %cst_46 = arith.constant 0.000000e+00 : f32
    %76 = vector.broadcast %cst_46 : f32 to vector<24x32xf32>
    %77 = arith.cmpf oge, %75, %76 : vector<24x32xf32>
    %cst_47 = arith.constant 0.00999999977 : f32
    %78 = vector.broadcast %cst_47 : f32 to vector<24x32xf32>
    %79 = arith.mulf %78, %75 : vector<24x32xf32>
    %80 = arith.select %77, %75, %79 : vector<24x32xi1>, vector<24x32xf32>
    %cst_48 = arith.constant dense<0.000000e+00> : vector<24x32xf32>
    %81 = tpu.matmul %80, %0, %cst_48 {dimension_numbers = #tpu.dot_dimension_numbers<[1], [0], [0], [1], [0, 0, 1, 1], [], []>} : vector<24x32xf32>, vector<32x32xf32>, vector<24x32xf32> -> vector<24x32xf32>
    %82 = vector.broadcast %1 : vector<1x32xf32> to vector<24x32xf32>
    %83 = arith.addf %81, %82 : vector<24x32xf32>
    %cst_49 = arith.constant 0.000000e+00 : f32
    %84 = vector.broadcast %cst_49 : f32 to vector<24x32xf32>
    %85 = arith.cmpf oge, %83, %84 : vector<24x32xf32>
    %cst_50 = arith.constant 0.00999999977 : f32
    %86 = vector.broadcast %cst_50 : f32 to vector<24x32xf32>
    %87 = arith.mulf %86, %83 : vector<24x32xf32>
    %88 = arith.select %85, %83, %87 : vector<24x32xi1>, vector<24x32xf32>
    %cst_51 = arith.constant dense<0.000000e+00> : vector<24x64xf32>
    %89 = tpu.matmul %88, %2, %cst_51 {dimension_numbers = #tpu.dot_dimension_numbers<[1], [0], [0], [1], [0, 0, 1, 1], [], []>} : vector<24x32xf32>, vector<32x64xf32>, vector<24x64xf32> -> vector<24x64xf32>
    %90 = vector.broadcast %3 : vector<1x64xf32> to vector<24x64xf32>
    %91 = arith.addf %89, %90 : vector<24x64xf32>
    %cst_52 = arith.constant 0.000000e+00 : f32
    %92 = vector.broadcast %cst_52 : f32 to vector<24x64xf32>
    %93 = arith.cmpf oge, %91, %92 : vector<24x64xf32>
    %cst_53 = arith.constant 0.00999999977 : f32
    %94 = vector.broadcast %cst_53 : f32 to vector<24x64xf32>
    %95 = arith.mulf %94, %91 : vector<24x64xf32>
    %96 = arith.select %93, %91, %95 : vector<24x64xi1>, vector<24x64xf32>
    %cst_54 = arith.constant dense<0.000000e+00> : vector<24x64xf32>
    %97 = tpu.matmul %9, %96, %cst_54 {dimension_numbers = #tpu.dot_dimension_numbers<[1], [0], [0], [1], [0, 0, 1, 1], [], []>} : vector<24x24xf32>, vector<24x64xf32>, vector<24x64xf32> -> vector<24x64xf32>
    %cst_55 = arith.constant dense<0.000000e+00> : vector<24x32xf32>
    %98 = tpu.matmul %80, %4, %cst_55 {dimension_numbers = #tpu.dot_dimension_numbers<[1], [0], [0], [1], [0, 0, 1, 1], [], []>} : vector<24x32xf32>, vector<32x32xf32>, vector<24x32xf32> -> vector<24x32xf32>
    %cst_56 = arith.constant dense<0.000000e+00> : vector<24x32xf32>
    %99 = tpu.matmul %97, %5, %cst_56 {dimension_numbers = #tpu.dot_dimension_numbers<[1], [0], [0], [1], [0, 0, 1, 1], [], []>} : vector<24x64xf32>, vector<64x32xf32>, vector<24x32xf32> -> vector<24x32xf32>
    %100 = arith.addf %98, %99 : vector<24x32xf32>
    %101 = vector.broadcast %6 : vector<1x32xf32> to vector<24x32xf32>
    %102 = arith.addf %100, %101 : vector<24x32xf32>
    %cst_57 = arith.constant 0.000000e+00 : f32
    %103 = vector.broadcast %cst_57 : f32 to vector<24x32xf32>
    %104 = arith.cmpf oge, %102, %103 : vector<24x32xf32>
    %cst_58 = arith.constant 0.00999999977 : f32
    %105 = vector.broadcast %cst_58 : f32 to vector<24x32xf32>
    %106 = arith.mulf %105, %102 : vector<24x32xf32>
    %107 = arith.select %104, %102, %106 : vector<24x32xi1>, vector<24x32xf32>
    %cst_59 = arith.constant dense<0.000000e+00> : vector<24x32xf32>
    %108 = tpu.matmul %107, %7, %cst_59 {dimension_numbers = #tpu.dot_dimension_numbers<[1], [0], [0], [1], [0, 0, 1, 1], [], []>} : vector<24x32xf32>, vector<32x32xf32>, vector<24x32xf32> -> vector<24x32xf32>
    %109 = vector.broadcast %8 : vector<1x32xf32> to vector<24x32xf32>
    %110 = arith.addf %108, %109 : vector<24x32xf32>
    %cst_60 = arith.constant 0.000000e+00 : f32
    %111 = vector.broadcast %cst_60 : f32 to vector<24x32xf32>
    %112 = arith.cmpf oge, %110, %111 : vector<24x32xf32>
    %cst_61 = arith.constant 0.00999999977 : f32
    %113 = vector.broadcast %cst_61 : f32 to vector<24x32xf32>
    %114 = arith.mulf %113, %110 : vector<24x32xf32>
    %115 = arith.select %112, %110, %114 : vector<24x32xi1>, vector<24x32xf32>
    %116 = vector.extract_strided_slice %115 {offsets = [0, 0], sizes = [8, 32], strides = [1, 1]} : vector<24x32xf32> to vector<8x32xf32>
    %c0_62 = arith.constant 0 : index
    %c0_63 = arith.constant 0 : index
    %117 = vector.load %arg11[%c0_62, %c0_63] : memref<32x32xf32, #tpu.memory_space<vmem>>, vector<32x32xf32>
    %cst_64 = arith.constant dense<0.000000e+00> : vector<8x32xf32>
    %118 = tpu.matmul %116, %117, %cst_64 {dimension_numbers = #tpu.dot_dimension_numbers<[1], [0], [0], [1], [0, 0, 1, 1], [], []>} : vector<8x32xf32>, vector<32x32xf32>, vector<8x32xf32> -> vector<8x32xf32>
    %c0_65 = arith.constant 0 : index
    %c0_66 = arith.constant 0 : index
    %119 = vector.load %arg12[%c0_65, %c0_66] : memref<1x32xf32, #tpu.memory_space<vmem>>, vector<1x32xf32>
    %120 = vector.broadcast %119 : vector<1x32xf32> to vector<8x32xf32>
    %121 = arith.addf %118, %120 : vector<8x32xf32>
    %122 = math.tanh %121 : vector<8x32xf32>
    %123 = arith.mulf %122, %122 : vector<8x32xf32>
    %124 = vector.shape_cast %123 : vector<8x32xf32> to vector<1x8x32xf32>
    %cst_67 = arith.constant dense<0.000000e+00> : vector<1xf32>
    %125 = vector.multi_reduction <add>, %124, %cst_67 [1, 2] : vector<1x8x32xf32> to vector<1xf32>
    %126 = vector.shape_cast %125 : vector<1xf32> to vector<1x1x1xf32>
    %127 = vector.extract %126[0, 0, 0] : f32 from vector<1x1x1xf32>
    %cst_68 = arith.constant 1.000000e+00 : f32
    %128 = arith.cmpf ogt, %127, %cst_68 : f32
    %129 = math.rsqrt %127 : f32
    %cst_69 = arith.constant 1.000000e+00 : f32
    %130 = arith.select %128, %129, %cst_69 : f32
    %131 = vector.broadcast %130 : f32 to vector<8x32xf32>
    %132 = arith.mulf %122, %131 : vector<8x32xf32>
    %c0_70 = arith.constant 0 : index
    %c0_71 = arith.constant 0 : index
    %133 = vector.load %arg13[%c0_70, %c0_71] : memref<8x32xf32, #tpu.memory_space<vmem>>, vector<8x32xf32>
    tpu.vector_store %arg13[%c0_70, %c0_71], %132 {strides = array<i32>} : memref<8x32xf32, #tpu.memory_space<vmem>>, vector<8x32xf32>,
    return
  }
}

</mosaic_0001>

<llo_original>
// kernel: fdgnn_forward.1
$region0: #{fdgnn_forward.1}
  #allocation0 [shape = 'u32[]', space=smem, size = 0x4, offset = 0x4, fixed_abs, tag = 'smem constant byte address 0x4 - core index']
  #allocation1 [shape = 'u32[144,128]{1,0:T(1,128)}', space=vmem, size = 0x12000, scoped, tag = 'internal scratch']
  %s0 = inlined_call_operand.vmem [shape: f32[24,32], index: 0, kind: input, shape index: {}]
  %s1 = inlined_call_operand.vmem [shape: f32[24,24], index: 1, kind: input, shape index: {}]
  %s2 = inlined_call_operand.vmem [shape: f32[32,32], index: 2, kind: input, shape index: {}]
  %s3 = inlined_call_operand.vmem [shape: f32[1,32], index: 3, kind: input, shape index: {}]
  %s4 = inlined_call_operand.vmem [shape: f32[32,64], index: 4, kind: input, shape index: {}]
  %s5 = inlined_call_operand.vmem [shape: f32[1,64], index: 5, kind: input, shape index: {}]
  %s6 = inlined_call_operand.vmem [shape: f32[32,32], index: 6, kind: input, shape index: {}]
  %s7 = inlined_call_operand.vmem [shape: f32[64,32], index: 7, kind: input, shape index: {}]
  %s8 = inlined_call_operand.vmem [shape: f32[1,32], index: 8, kind: input, shape index: {}]
  %s9 = inlined_call_operand.vmem [shape: f32[32,32], index: 9, kind: input, shape index: {}]
  %s10 = inlined_call_operand.vmem [shape: f32[1,32], index: 10, kind: input, shape index: {}]
  %s11 = inlined_call_operand.vmem [shape: f32[32,32], index: 11, kind: input, shape index: {}]
  %s12 = inlined_call_operand.vmem [shape: f32[1,32], index: 12, kind: input, shape index: {}]
  %s13 = inlined_call_operand.hbm [shape: f32[8,32], index: 13, kind: output, shape index: {}]
  %s14 = sld [smem:[#allocation0]]
  $region62: #{fdgnn_forward.1} parent=0
    _
  %s16 = ssub.s32 1, %s14
  %s17 = scalar_select 0, %s16, %s14
  $region1: #{fdgnn_forward.1} parent=0
    #allocation2 [shape = 'u8[4096]{0}', space=vmem, size = 0x1000, scoped, tag = 'output window, operand 0, single buffered']
    #allocation3 [shape = 's32[1]{0}', space=sflag, size = 0x4, scoped, tag = 'scoped memory for fdgnn_forward.1']
    %18 = vsyncpa [#allocation3], 0
    // Predicated region
    $region2: #{fdgnn_forward.1} parent=1 // pred_check
      _
    $region3: #{fdgnn_forward.1} parent=1 // pred_check_branch
      %20 = sbr.rel (0) target = $region5
    $region4: #{fdgnn_forward.1} parent=1 // pred_region
      _
    $region5: #{fdgnn_forward.1} parent=1 // pred_fallthru
      _
    // Predicated region
    $region6: #{fdgnn_forward.1} parent=1 // pred_check
      _
    $region7: #{fdgnn_forward.1} parent=1 // pred_check_branch
      %22 = sbr.rel (0) target = $region9
    $region8: #{fdgnn_forward.1} parent=1 // pred_region
      _
    $region9: #{fdgnn_forward.1} parent=1 // pred_fallthru
      _
    // Predicated region
    $region10: #{fdgnn_forward.1} parent=1 // pred_check
      _
    $region11: #{fdgnn_forward.1} parent=1 // pred_check_branch
      %24 = sbr.rel (0) target = $region13
    $region12: #{fdgnn_forward.1} parent=1 // pred_region
      _
    $region13: #{fdgnn_forward.1} parent=1 // pred_fallthru
      _
    // Predicated region
    $region14: #{fdgnn_forward.1} parent=1 // pred_check
      _
    $region15: #{fdgnn_forward.1} parent=1 // pred_check_branch
      %26 = sbr.rel (0) target = $region17
    $region16: #{fdgnn_forward.1} parent=1 // pred_region
      _
    $region17: #{fdgnn_forward.1} parent=1 // pred_fallthru
      _
    // Predicated region
    $region18: #{fdgnn_forward.1} parent=1 // pred_check
      _
    $region19: #{fdgnn_forward.1} parent=1 // pred_check_branch
      %28 = sbr.rel (0) target = $region21
    $region20: #{fdgnn_forward.1} parent=1 // pred_region
      _
    $region21: #{fdgnn_forward.1} parent=1 // pred_fallthru
      _
    // Predicated region
    $region22: #{fdgnn_forward.1} parent=1 // pred_check
      _
    $region23: #{fdgnn_forward.1} parent=1 // pred_check_branch
      %30 = sbr.rel (0) target = $region25
    $region24: #{fdgnn_forward.1} parent=1 // pred_region
      _
    $region25: #{fdgnn_forward.1} parent=1 // pred_fallthru
      _
    // Predicated region
    $region26: #{fdgnn_forward.1} parent=1 // pred_check
      _
    $region27: #{fdgnn_forward.1} parent=1 // pred_check_branch
      %32 = sbr.rel (0) target = $region29
    $region28: #{fdgnn_forward.1} parent=1 // pred_region
      _
    $region29: #{fdgnn_forward.1} parent=1 // pred_fallthru
      _
    // Predicated region
    $region30: #{fdgnn_forward.1} parent=1 // pred_check
      _
    $region31: #{fdgnn_forward.1} parent=1 // pred_check_branch
      %34 = sbr.rel (0) target = $region33
    $region32: #{fdgnn_forward.1} parent=1 // pred_region
      _
    $region33: #{fdgnn_forward.1} parent=1 // pred_fallthru
      _
    // Predicated region
    $region34: #{fdgnn_forward.1} parent=1 // pred_check
      _
    $region35: #{fdgnn_forward.1} parent=1 // pred_check_branch
      %36 = sbr.rel (0) target = $region37
    $region36: #{fdgnn_forward.1} parent=1 // pred_region
      _
    $region37: #{fdgnn_forward.1} parent=1 // pred_fallthru
      _
    // Predicated region
    $region38: #{fdgnn_forward.1} parent=1 // pred_check
      _
    $region39: #{fdgnn_forward.1} parent=1 // pred_check_branch
      %38 = sbr.rel (0) target = $region41
    $region40: #{fdgnn_forward.1} parent=1 // pred_region
      _
    $region41: #{fdgnn_forward.1} parent=1 // pred_fallthru
      _
    // Predicated region
    $region42: #{fdgnn_forward.1} parent=1 // pred_check
      _
    $region43: #{fdgnn_forward.1} parent=1 // pred_check_branch
      %40 = sbr.rel (0) target = $region45
    $region44: #{fdgnn_forward.1} parent=1 // pred_region
      _
    $region45: #{fdgnn_forward.1} parent=1 // pred_fallthru
      _
    // Predicated region
    $region46: #{fdgnn_forward.1} parent=1 // pred_check
      _
    $region47: #{fdgnn_forward.1} parent=1 // pred_check_branch
      %42 = sbr.rel (0) target = $region49
    $region48: #{fdgnn_forward.1} parent=1 // pred_region
      _
    $region49: #{fdgnn_forward.1} parent=1 // pred_fallthru
      _
    // Predicated region
    $region50: #{fdgnn_forward.1} parent=1 // pred_check
      _
    $region51: #{fdgnn_forward.1} parent=1 // pred_check_branch
      %44 = sbr.rel (0) target = $region53
    $region52: #{fdgnn_forward.1} parent=1 // pred_region
      _
    $region53: #{fdgnn_forward.1} parent=1 // pred_fallthru
      _
    %v45 = vld [vmem:[%s2] sm:$0xff]
    %v46 = vld [vmem:[%s2 + $0x8] sm:$0xff]
    %v47 = vld [vmem:[%s2 + $0x10] sm:$0xff]
    %v48 = vld [vmem:[%s2 + $0x18] sm:$0xff]
    %v49 = vld [vmem:[%s3] sm:$0x1]
    %v50 = vld [vmem:[%s4] sm:$0xff]
    %v51 = vld [vmem:[%s4 + $0x8] sm:$0xff]
    %v52 = vld [vmem:[%s4 + $0x10] sm:$0xff]
    %v53 = vld [vmem:[%s4 + $0x18] sm:$0xff]
    %v54 = vld [vmem:[%s5] sm:$0x1]
    %v55 = vld [vmem:[%s6] sm:$0xff]
    %v56 = vld [vmem:[%s6 + $0x8] sm:$0xff]
    %v57 = vld [vmem:[%s6 + $0x10] sm:$0xff]
    %v58 = vld [vmem:[%s6 + $0x18] sm:$0xff]
    %v59 = vld [vmem:[%s7] sm:$0xff]
    %v60 = vld [vmem:[%s7 + $0x8] sm:$0xff]
    %v61 = vld [vmem:[%s7 + $0x10] sm:$0xff]
    %v62 = vld [vmem:[%s7 + $0x18] sm:$0xff]
    %v63 = vld [vmem:[%s7 + $0x20] sm:$0xff]
    %v64 = vld [vmem:[%s7 + $0x28] sm:$0xff]
    %v65 = vld [vmem:[%s7 + $0x30] sm:$0xff]
    %v66 = vld [vmem:[%s7 + $0x38] sm:$0xff]
    %v67 = vld [vmem:[%s8] sm:$0x1]
    %v68 = vld [vmem:[%s9] sm:$0xff]
    %v69 = vld [vmem:[%s9 + $0x8] sm:$0xff]
    %v70 = vld [vmem:[%s9 + $0x10] sm:$0xff]
    %v71 = vld [vmem:[%s9 + $0x18] sm:$0xff]
    %v72 = vld [vmem:[%s10] sm:$0x1]
    %v73 = vld [vmem:[%s1] sm:$0xff]
    %v74 = vld [vmem:[%s1 + $0x8] sm:$0xff]
    %v75 = vld [vmem:[%s1 + $0x10] sm:$0xff]
    %v76 = vld [vmem:[%s0] sm:$0xff]
    %v77 = vld [vmem:[%s0 + $0x8] sm:$0xff]
    %v78 = vld [vmem:[%s0 + $0x10] sm:$0xff]
    %v80 = vlaneseq
    %v81 = vshrl.u32 %v80, 7
    %v82 = vsub.s32 0, %v81
    %v83 = vrot.slane %v49, %v82
    %vm85 = vcmask 261120
    %v87 = vsel %vm85, %v76, 0
    %v90 = vsel %vm85, %v77, 0
    %v93 = vsel %vm85, %v78, 0
    %95 = vmatprep.subr.mxu0 0.0
    %96 = vmatpush1.msra.mxu0 %v45
    %97 = vmatprep.subr.mxu0 0.0
    %98 = vmatpush1.msra.mxu0 %v46
    %99 = vmatprep.subr.mxu0 0.0
    %100 = vmatpush1.msra.mxu0 %v47
    %101 = vmatprep.subr.mxu0 0.0
    %102 = vmatpush1.msra.mxu0 %v48
    %103 = vmatprep.subr.mxu0 0.0
    %104 = vmatpush1.msra.mxu0 0.0
    %105 = vmatprep.subr.mxu0 0.0
    %106 = vmatpush1.msra.mxu0 0.0
    %107 = vmatprep.subr.mxu0 0.0
    %108 = vmatpush1.msra.mxu0 0.0
    %109 = vmatprep.subr.mxu0 0.0
    %110 = vmatpush1.msra.mxu0 0.0
    %111 = vmatprep.subr.mxu0 0.0
    %112 = vmatpush1.msra.mxu0 0.0
    %113 = vmatprep.subr.mxu0 0.0
    %114 = vmatpush1.msra.mxu0 0.0
    %115 = vmatprep.subr.mxu0 0.0
    %116 = vmatpush1.msra.mxu0 0.0
    %117 = vmatprep.subr.mxu0 0.0
    %118 = vmatpush1.msra.mxu0 0.0
    %119 = vmatprep.subr.mxu0 0.0
    %120 = vmatpush1.msra.mxu0 0.0
    %121 = vmatprep.subr.mxu0 0.0
    %122 = vmatpush1.msra.mxu0 0.0
    %123 = vmatprep.subr.mxu0 0.0
    %124 = vmatpush1.msra.mxu0 0.0
    %125 = vmatprep.subr.mxu0 0.0
    %126 = vmatpush1.msra.mxu0 0.0
    %127 = vmatprep.subr.mxu0 0.0
    %128 = vmatpush1.msra.mxu0 0.0
    %129 = vmatprep.subr.mxu0 0.0
    %130 = vmatpush1.msra.mxu0 0.0
    %131 = vmatprep.subr.mxu0 0.0
    %132 = vmatpush1.msra.mxu0 0.0
    %133 = vmatprep.subr.mxu0 0.0
    %134 = vmatpush1.msra.mxu0 0.0
    %135 = vmatprep.subr.mxu0 0.0
    %136 = vmatpush1.msra.mxu0 0.0
    %137 = vmatprep.subr.mxu0 0.0
    %138 = vmatpush1.msra.mxu0 0.0
    %139 = vmatprep.subr.mxu0 0.0
    %140 = vmatpush1.msra.mxu0 0.0
    %141 = vmatprep.subr.mxu0 0.0
    %142 = vmatpush1.msra.mxu0 0.0
    %143 = vmatprep.subr.mxu0 0.0
    %144 = vmatpush1.msra.mxu0 0.0
    %145 = vmatprep.subr.mxu0 0.0
    %146 = vmatpush1.msra.mxu0 0.0
    %147 = vmatprep.subr.mxu0 0.0
    %148 = vmatpush1.msra.mxu0 0.0
    %149 = vmatprep.subr.mxu0 0.0
    %150 = vmatpush1.msra.mxu0 0.0
    %151 = vmatprep.subr.mxu0 0.0
    %152 = vmatpush1.msra.mxu0 0.0
    %153 = vmatprep.subr.mxu0 0.0
    %154 = vmatpush1.msra.mxu0 0.0
    %155 = vmatprep.subr.mxu0 0.0
    %156 = vmatpush1.msra.mxu0 0.0
    %157 = vmatprep.subr.mxu0 0.0
    %158 = vmatpush1.msra.mxu0 0.0
    %159 = vmatprep.mubr.f32.mxu0 0.0
    %160 = vmatmul.mubr.f32.gmra.mrb[0].mxu0 %v87
    %v161 = vpop.f32.mrb[0].mxu0
    %v162 = vadd.f32 %v83, %v161
    %v163 = vpop.f32.mrb[0].mxu0
    %164 = vmatprep.mubr.f32.mxu0 0.0
    %165 = vmatmul.mubr.f32.gmra.mrb[0].mxu0 %v90
    %v166 = vpop.f32.mrb[0].mxu0
    %v167 = vadd.f32 %v83, %v166
    %v168 = vpop.f32.mrb[0].mxu0
    %169 = vmatprep.mubr.f32.mxu0 0.0
    %170 = vmatmul.mubr.f32.gmra.mrb[0].mxu0 %v93
    %v171 = vpop.f32.mrb[0].mxu0
    %v172 = vadd.f32 %v83, %v171
    %v173 = vpop.f32.mrb[0].mxu0
    %174 = vdwg.mxu0
    %vm175 = vcmp.ge.f32.partialorder %v162, 0.0
    %vm176 = vcmp.ge.f32.partialorder %v167, 0.0
    %vm177 = vcmp.ge.f32.partialorder %v172, 0.0
    %v178 = vmul.f32 %v162, 0.01
    %v179 = vmul.f32 %v167, 0.01
    %v180 = vmul.f32 %v172, 0.01
    %v181 = vsel %vm175, %v162, %v178
    %v182 = vsel %vm176, %v167, %v179
    %v183 = vsel %vm177, %v172, %v180
    %v185 = vlaneseq
    %v186 = vshrl.u32 %v185, 7
    %v187 = vsub.s32 0, %v186
    %v188 = vrot.slane %v54, %v187
    %v191 = vsel %vm85, %v181, 0
    %v194 = vsel %vm85, %v182, 0
    %v197 = vsel %vm85, %v183, 0
    %199 = vmatprep.subr.mxu0 0.0
    %200 = vmatpush1.msra.mxu0 %v50
    %201 = vmatprep.subr.mxu0 0.0
    %202 = vmatpush1.msra.mxu0 %v51
    %203 = vmatprep.subr.mxu0 0.0
    %204 = vmatpush1.msra.mxu0 %v52
    %205 = vmatprep.subr.mxu0 0.0
    %206 = vmatpush1.msra.mxu0 %v53
    %207 = vmatprep.subr.mxu0 0.0
    %208 = vmatpush1.msra.mxu0 0.0
    %209 = vmatprep.subr.mxu0 0.0
    %210 = vmatpush1.msra.mxu0 0.0
    %211 = vmatprep.subr.mxu0 0.0
    %212 = vmatpush1.msra.mxu0 0.0
    %213 = vmatprep.subr.mxu0 0.0
    %214 = vmatpush1.msra.mxu0 0.0
    %215 = vmatprep.subr.mxu0 0.0
    %216 = vmatpush1.msra.mxu0 0.0
    %217 = vmatprep.subr.mxu0 0.0
    %218 = vmatpush1.msra.mxu0 0.0
    %219 = vmatprep.subr.mxu0 0.0
    %220 = vmatpush1.msra.mxu0 0.0
    %221 = vmatprep.subr.mxu0 0.0
    %222 = vmatpush1.msra.mxu0 0.0
    %223 = vmatprep.subr.mxu0 0.0
    %224 = vmatpush1.msra.mxu0 0.0
    %225 = vmatprep.subr.mxu0 0.0
    %226 = vmatpush1.msra.mxu0 0.0
    %227 = vmatprep.subr.mxu0 0.0
    %228 = vmatpush1.msra.mxu0 0.0
    %229 = vmatprep.subr.mxu0 0.0
    %230 = vmatpush1.msra.mxu0 0.0
    %231 = vmatprep.subr.mxu0 0.0
    %232 = vmatpush1.msra.mxu0 0.0
    %233 = vmatprep.subr.mxu0 0.0
    %234 = vmatpush1.msra.mxu0 0.0
    %235 = vmatprep.subr.mxu0 0.0
    %236 = vmatpush1.msra.mxu0 0.0
    %237 = vmatprep.subr.mxu0 0.0
    %238 = vmatpush1.msra.mxu0 0.0
    %239 = vmatprep.subr.mxu0 0.0
    %240 = vmatpush1.msra.mxu0 0.0
    %241 = vmatprep.subr.mxu0 0.0
    %242 = vmatpush1.msra.mxu0 0.0
    %243 = vmatprep.subr.mxu0 0.0
    %244 = vmatpush1.msra.mxu0 0.0
    %245 = vmatprep.subr.mxu0 0.0
    %246 = vmatpush1.msra.mxu0 0.0
    %247 = vmatprep.subr.mxu0 0.0
    %248 = vmatpush1.msra.mxu0 0.0
    %249 = vmatprep.subr.mxu0 0.0
    %250 = vmatpush1.msra.mxu0 0.0
    %251 = vmatprep.subr.mxu0 0.0
    %252 = vmatpush1.msra.mxu0 0.0
    %253 = vmatprep.subr.mxu0 0.0
    %254 = vmatpush1.msra.mxu0 0.0
    %255 = vmatprep.subr.mxu0 0.0
    %256 = vmatpush1.msra.mxu0 0.0
    %257 = vmatprep.subr.mxu0 0.0
    %258 = vmatpush1.msra.mxu0 0.0
    %259 = vmatprep.subr.mxu0 0.0
    %260 = vmatpush1.msra.mxu0 0.0
    %261 = vmatprep.subr.mxu0 0.0
    %262 = vmatpush1.msra.mxu0 0.0
    %263 = vmatprep.mubr.f32.mxu0 0.0
    %264 = vmatmul.mubr.f32.gmra.mrb[0].mxu0 %v191
    %v265 = vpop.f32.mrb[0].mxu0
    %v266 = vadd.f32 %v188, %v265
    %v267 = vpop.f32.mrb[0].mxu0
    %268 = vmatprep.mubr.f32.mxu0 0.0
    %269 = vmatmul.mubr.f32.gmra.mrb[0].mxu0 %v194
    %v270 = vpop.f32.mrb[0].mxu0
    %v271 = vadd.f32 %v188, %v270
    %v272 = vpop.f32.mrb[0].mxu0
    %273 = vmatprep.mubr.f32.mxu0 0.0
    %274 = vmatmul.mubr.f32.gmra.mrb[0].mxu0 %v197
    %v275 = vpop.f32.mrb[0].mxu0
    %v276 = vadd.f32 %v188, %v275
    %v277 = vpop.f32.mrb[0].mxu0
    %278 = vdwg.mxu0
    %vm279 = vcmp.ge.f32.partialorder %v266, 0.0
    %vm280 = vcmp.ge.f32.partialorder %v271, 0.0
    %vm281 = vcmp.ge.f32.partialorder %v276, 0.0
    %v282 = vmul.f32 %v266, 0.01
    %v283 = vmul.f32 %v271, 0.01
    %v284 = vmul.f32 %v276, 0.01
    %v285 = vsel %vm279, %v266, %v282
    %v286 = vsel %vm280, %v271, %v283
    %v287 = vsel %vm281, %v276, %v284
    %vm288 = vcmask 195584
    %v290 = vsel %vm288, %v73, 0
    %v293 = vsel %vm288, %v74, 0
    %v296 = vsel %vm288, %v75, 0
    %298 = vmatprep.subr.mxu0 0.0
    %299 = vmatpush1.msra.mxu0 %v285
    %300 = vmatprep.subr.mxu0 0.0
    %301 = vmatpush1.msra.mxu0 %v286
    %302 = vmatprep.subr.mxu0 0.0
    %303 = vmatpush1.msra.mxu0 %v287
    %304 = vmatprep.subr.mxu0 0.0
    %305 = vmatpush1.msra.mxu0 0.0
    %306 = vmatprep.subr.mxu0 0.0
    %307 = vmatpush1.msra.mxu0 0.0
    %308 = vmatprep.subr.mxu0 0.0
    %309 = vmatpush1.msra.mxu0 0.0
    %310 = vmatprep.subr.mxu0 0.0
    %311 = vmatpush1.msra.mxu0 0.0
    %312 = vmatprep.subr.mxu0 0.0
    %313 = vmatpush1.msra.mxu0 0.0
    %314 = vmatprep.subr.mxu0 0.0
    %315 = vmatpush1.msra.mxu0 0.0
    %316 = vmatprep.subr.mxu0 0.0
    %317 = vmatpush1.msra.mxu0 0.0
    %318 = vmatprep.subr.mxu0 0.0
    %319 = vmatpush1.msra.mxu0 0.0
    %320 = vmatprep.subr.mxu0 0.0
    %321 = vmatpush1.msra.mxu0 0.0
    %322 = vmatprep.subr.mxu0 0.0
    %323 = vmatpush1.msra.mxu0 0.0
    %324 = vmatprep.subr.mxu0 0.0
    %325 = vmatpush1.msra.mxu0 0.0
    %326 = vmatprep.subr.mxu0 0.0
    %327 = vmatpush1.msra.mxu0 0.0
    %328 = vmatprep.subr.mxu0 0.0
    %329 = vmatpush1.msra.mxu0 0.0
    %330 = vmatprep.subr.mxu0 0.0
    %331 = vmatpush1.msra.mxu0 0.0
    %332 = vmatprep.subr.mxu0 0.0
    %333 = vmatpush1.msra.mxu0 0.0
    %334 = vmatprep.subr.mxu0 0.0
    %335 = vmatpush1.msra.mxu0 0.0
    %336 = vmatprep.subr.mxu0 0.0
    %337 = vmatpush1.msra.mxu0 0.0
    %338 = vmatprep.subr.mxu0 0.0
    %339 = vmatpush1.msra.mxu0 0.0
    %340 = vmatprep.subr.mxu0 0.0
    %341 = vmatpush1.msra.mxu0 0.0
    %342 = vmatprep.subr.mxu0 0.0
    %343 = vmatpush1.msra.mxu0 0.0
    %344 = vmatprep.subr.mxu0 0.0
    %345 = vmatpush1.msra.mxu0 0.0
    %346 = vmatprep.subr.mxu0 0.0
    %347 = vmatpush1.msra.mxu0 0.0
    %348 = vmatprep.subr.mxu0 0.0
    %349 = vmatpush1.msra.mxu0 0.0
    %350 = vmatprep.subr.mxu0 0.0
    %351 = vmatpush1.msra.mxu0 0.0
    %352 = vmatprep.subr.mxu0 0.0
    %353 = vmatpush1.msra.mxu0 0.0
    %354 = vmatprep.subr.mxu0 0.0
    %355 = vmatpush1.msra.mxu0 0.0
    %356 = vmatprep.subr.mxu0 0.0
    %357 = vmatpush1.msra.mxu0 0.0
    %358 = vmatprep.subr.mxu0 0.0
    %359 = vmatpush1.msra.mxu0 0.0
    %360 = vmatprep.subr.mxu0 0.0
    %361 = vmatpush1.msra.mxu0 0.0
    %362 = vmatprep.mubr.f32.mxu0 0.0
    %363 = vmatmul.mubr.f32.gmra.mrb[0].mxu0 %v290
    %v364 = vpop.f32.mrb[0].mxu0
    %v365 = vadd.f32 0.0, %v364
    %v366 = vpop.f32.mrb[0].mxu0
    %367 = vmatprep.mubr.f32.mxu0 0.0
    %368 = vmatmul.mubr.f32.gmra.mrb[0].mxu0 %v293
    %v369 = vpop.f32.mrb[0].mxu0
    %v370 = vadd.f32 0.0, %v369
    %v371 = vpop.f32.mrb[0].mxu0
    %372 = vmatprep.mubr.f32.mxu0 0.0
    %373 = vmatmul.mubr.f32.gmra.mrb[0].mxu0 %v296
    %v374 = vpop.f32.mrb[0].mxu0
    %v375 = vadd.f32 0.0, %v374
    %v376 = vpop.f32.mrb[0].mxu0
    %377 = vdwg.mxu0
    %vm378 = vcmask 523264
    %v380 = vsel %vm378, %v365, 0
    %v383 = vsel %vm378, %v370, 0
    %v386 = vsel %vm378, %v375, 0
    %388 = vmatprep.subr.mxu0 0.0
    %389 = vmatpush1.msra.mxu0 %v59
    %390 = vmatprep.subr.mxu0 0.0
    %391 = vmatpush1.msra.mxu0 %v60
    %392 = vmatprep.subr.mxu0 0.0
    %393 = vmatpush1.msra.mxu0 %v61
    %394 = vmatprep.subr.mxu0 0.0
    %395 = vmatpush1.msra.mxu0 %v62
    %396 = vmatprep.subr.mxu0 0.0
    %397 = vmatpush1.msra.mxu0 %v63
    %398 = vmatprep.subr.mxu0 0.0
    %399 = vmatpush1.msra.mxu0 %v64
    %400 = vmatprep.subr.mxu0 0.0
    %401 = vmatpush1.msra.mxu0 %v65
    %402 = vmatprep.subr.mxu0 0.0
    %403 = vmatpush1.msra.mxu0 %v66
    %404 = vmatprep.subr.mxu0 0.0
    %405 = vmatpush1.msra.mxu0 0.0
    %406 = vmatprep.subr.mxu0 0.0
    %407 = vmatpush1.msra.mxu0 0.0
    %408 = vmatprep.subr.mxu0 0.0
    %409 = vmatpush1.msra.mxu0 0.0
    %410 = vmatprep.subr.mxu0 0.0
    %411 = vmatpush1.msra.mxu0 0.0
    %412 = vmatprep.subr.mxu0 0.0
    %413 = vmatpush1.msra.mxu0 0.0
    %414 = vmatprep.subr.mxu0 0.0
    %415 = vmatpush1.msra.mxu0 0.0
    %416 = vmatprep.subr.mxu0 0.0
    %417 = vmatpush1.msra.mxu0 0.0
    %418 = vmatprep.subr.mxu0 0.0
    %419 = vmatpush1.msra.mxu0 0.0
    %420 = vmatprep.subr.mxu0 0.0
    %421 = vmatpush1.msra.mxu0 0.0
    %422 = vmatprep.subr.mxu0 0.0
    %423 = vmatpush1.msra.mxu0 0.0
    %424 = vmatprep.subr.mxu0 0.0
    %425 = vmatpush1.msra.mxu0 0.0
    %426 = vmatprep.subr.mxu0 0.0
    %427 = vmatpush1.msra.mxu0 0.0
    %428 = vmatprep.subr.mxu0 0.0
    %429 = vmatpush1.msra.mxu0 0.0
    %430 = vmatprep.subr.mxu0 0.0
    %431 = vmatpush1.msra.mxu0 0.0
    %432 = vmatprep.subr.mxu0 0.0
    %433 = vmatpush1.msra.mxu0 0.0
    %434 = vmatprep.subr.mxu0 0.0
    %435 = vmatpush1.msra.mxu0 0.0
    %436 = vmatprep.subr.mxu0 0.0
    %437 = vmatpush1.msra.mxu0 0.0
    %438 = vmatprep.subr.mxu0 0.0
    %439 = vmatpush1.msra.mxu0 0.0
    %440 = vmatprep.subr.mxu0 0.0
    %441 = vmatpush1.msra.mxu0 0.0
    %442 = vmatprep.subr.mxu0 0.0
    %443 = vmatpush1.msra.mxu0 0.0
    %444 = vmatprep.subr.mxu0 0.0
    %445 = vmatpush1.msra.mxu0 0.0
    %446 = vmatprep.subr.mxu0 0.0
    %447 = vmatpush1.msra.mxu0 0.0
    %448 = vmatprep.subr.mxu0 0.0
    %449 = vmatpush1.msra.mxu0 0.0
    %450 = vmatprep.subr.mxu0 0.0
    %451 = vmatpush1.msra.mxu0 0.0
    %452 = vmatprep.mubr.f32.mxu0 0.0
    %453 = vmatmul.mubr.f32.gmra.mrb[0].mxu0 %v380
    %v454 = vpop.f32.mrb[0].mxu0
    %v455 = vadd.f32 0.0, %v454
    %v456 = vpop.f32.mrb[0].mxu0
    %457 = vmatprep.mubr.f32.mxu0 0.0
    %458 = vmatmul.mubr.f32.gmra.mrb[0].mxu0 %v383
    %v459 = vpop.f32.mrb[0].mxu0
    %v460 = vadd.f32 0.0, %v459
    %v461 = vpop.f32.mrb[0].mxu0
    %462 = vmatprep.mubr.f32.mxu0 0.0
    %463 = vmatmul.mubr.f32.gmra.mrb[0].mxu0 %v386
    %v464 = vpop.f32.mrb[0].mxu0
    %v465 = vadd.f32 0.0, %v464
    %v466 = vpop.f32.mrb[0].mxu0
    %467 = vdwg.mxu0
    %468 = vmatprep.subr.mxu0 0.0
    %469 = vmatpush1.msra.mxu0 %v55
    %470 = vmatprep.subr.mxu0 0.0
    %471 = vmatpush1.msra.mxu0 %v56
    %472 = vmatprep.subr.mxu0 0.0
    %473 = vmatpush1.msra.mxu0 %v57
    %474 = vmatprep.subr.mxu0 0.0
    %475 = vmatpush1.msra.mxu0 %v58
    %476 = vmatprep.subr.mxu0 0.0
    %477 = vmatpush1.msra.mxu0 0.0
    %478 = vmatprep.subr.mxu0 0.0
    %479 = vmatpush1.msra.mxu0 0.0
    %480 = vmatprep.subr.mxu0 0.0
    %481 = vmatpush1.msra.mxu0 0.0
    %482 = vmatprep.subr.mxu0 0.0
    %483 = vmatpush1.msra.mxu0 0.0
    %484 = vmatprep.subr.mxu0 0.0
    %485 = vmatpush1.msra.mxu0 0.0
    %486 = vmatprep.subr.mxu0 0.0
    %487 = vmatpush1.msra.mxu0 0.0
    %488 = vmatprep.subr.mxu0 0.0
    %489 = vmatpush1.msra.mxu0 0.0
    %490 = vmatprep.subr.mxu0 0.0
    %491 = vmatpush1.msra.mxu0 0.0
    %492 = vmatprep.subr.mxu0 0.0
    %493 = vmatpush1.msra.mxu0 0.0
    %494 = vmatprep.subr.mxu0 0.0
    %495 = vmatpush1.msra.mxu0 0.0
    %496 = vmatprep.subr.mxu0 0.0
    %497 = vmatpush1.msra.mxu0 0.0
    %498 = vmatprep.subr.mxu0 0.0
    %499 = vmatpush1.msra.mxu0 0.0
    %500 = vmatprep.subr.mxu0 0.0
    %501 = vmatpush1.msra.mxu0 0.0
    %502 = vmatprep.subr.mxu0 0.0
    %503 = vmatpush1.msra.mxu0 0.0
    %504 = vmatprep.subr.mxu0 0.0
    %505 = vmatpush1.msra.mxu0 0.0
    %506 = vmatprep.subr.mxu0 0.0
    %507 = vmatpush1.msra.mxu0 0.0
    %508 = vmatprep.subr.mxu0 0.0
    %509 = vmatpush1.msra.mxu0 0.0
    %510 = vmatprep.subr.mxu0 0.0
    %511 = vmatpush1.msra.mxu0 0.0
    %512 = vmatprep.subr.mxu0 0.0
    %513 = vmatpush1.msra.mxu0 0.0
    %514 = vmatprep.subr.mxu0 0.0
    %515 = vmatpush1.msra.mxu0 0.0
    %516 = vmatprep.subr.mxu0 0.0
    %517 = vmatpush1.msra.mxu0 0.0
    %518 = vmatprep.subr.mxu0 0.0
    %519 = vmatpush1.msra.mxu0 0.0
    %520 = vmatprep.subr.mxu0 0.0
    %521 = vmatpush1.msra.mxu0 0.0
    %522 = vmatprep.subr.mxu0 0.0
    %523 = vmatpush1.msra.mxu0 0.0
    %524 = vmatprep.subr.mxu0 0.0
    %525 = vmatpush1.msra.mxu0 0.0
    %526 = vmatprep.subr.mxu0 0.0
    %527 = vmatpush1.msra.mxu0 0.0
    %528 = vmatprep.subr.mxu0 0.0
    %529 = vmatpush1.msra.mxu0 0.0
    %530 = vmatprep.subr.mxu0 0.0
    %531 = vmatpush1.msra.mxu0 0.0
    %532 = vmatprep.mubr.f32.mxu0 0.0
    %533 = vmatmul.mubr.f32.gmra.mrb[0].mxu0 %v87
    %v534 = vpop.f32.mrb[0].mxu0
    %v535 = vadd.f32 %v455, %v534
    %v536 = vpop.f32.mrb[0].mxu0
    %537 = vmatprep.mubr.f32.mxu0 0.0
    %538 = vmatmul.mubr.f32.gmra.mrb[0].mxu0 %v90
    %v539 = vpop.f32.mrb[0].mxu0
    %v540 = vadd.f32 %v460, %v539
    %v541 = vpop.f32.mrb[0].mxu0
    %542 = vmatprep.mubr.f32.mxu0 0.0
    %543 = vmatmul.mubr.f32.gmra.mrb[0].mxu0 %v93
    %v544 = vpop.f32.mrb[0].mxu0
    %v545 = vadd.f32 %v465, %v544
    %v546 = vpop.f32.mrb[0].mxu0
    %547 = vdwg.mxu0
    %v549 = vlaneseq
    %v550 = vshrl.u32 %v549, 7
    %v551 = vsub.s32 0, %v550
    %v552 = vrot.slane %v67, %v551
    %v554 = vadd.f32 %v535, %v552
    %v555 = vadd.f32 %v540, %v552
    %v556 = vadd.f32 %v545, %v552
    %vm557 = vcmp.ge.f32.partialorder %v554, 0.0
    %vm558 = vcmp.ge.f32.partialorder %v555, 0.0
    %vm559 = vcmp.ge.f32.partialorder %v556, 0.0
    %v560 = vmul.f32 %v554, 0.01
    %v561 = vmul.f32 %v555, 0.01
    %v562 = vmul.f32 %v556, 0.01
    %v563 = vsel %vm557, %v554, %v560
    %v564 = vsel %vm558, %v555, %v561
    %v565 = vsel %vm559, %v556, %v562
    %v567 = vlaneseq
    %v568 = vshrl.u32 %v567, 7
    %v569 = vsub.s32 0, %v568
    %v570 = vrot.slane %v72, %v569
    %v573 = vsel %vm85, %v563, 0
    %v576 = vsel %vm85, %v564, 0
    %v579 = vsel %vm85, %v565, 0
    %581 = vmatprep.subr.mxu0 0.0
    %582 = vmatpush1.msra.mxu0 %v68
    %583 = vmatprep.subr.mxu0 0.0
    %584 = vmatpush1.msra.mxu0 %v69
    %585 = vmatprep.subr.mxu0 0.0
    %586 = vmatpush1.msra.mxu0 %v70
    %587 = vmatprep.subr.mxu0 0.0
    %588 = vmatpush1.msra.mxu0 %v71
    %589 = vmatprep.subr.mxu0 0.0
    %590 = vmatpush1.msra.mxu0 0.0
    %591 = vmatprep.subr.mxu0 0.0
    %592 = vmatpush1.msra.mxu0 0.0
    %593 = vmatprep.subr.mxu0 0.0
    %594 = vmatpush1.msra.mxu0 0.0
    %595 = vmatprep.subr.mxu0 0.0
    %596 = vmatpush1.msra.mxu0 0.0
    %597 = vmatprep.subr.mxu0 0.0
    %598 = vmatpush1.msra.mxu0 0.0
    %599 = vmatprep.subr.mxu0 0.0
    %600 = vmatpush1.msra.mxu0 0.0
    %601 = vmatprep.subr.mxu0 0.0
    %602 = vmatpush1.msra.mxu0 0.0
    %603 = vmatprep.subr.mxu0 0.0
    %604 = vmatpush1.msra.mxu0 0.0
    %605 = vmatprep.subr.mxu0 0.0
    %606 = vmatpush1.msra.mxu0 0.0
    %607 = vmatprep.subr.mxu0 0.0
    %608 = vmatpush1.msra.mxu0 0.0
    %609 = vmatprep.subr.mxu0 0.0
    %610 = vmatpush1.msra.mxu0 0.0
    %611 = vmatprep.subr.mxu0 0.0
    %612 = vmatpush1.msra.mxu0 0.0
    %613 = vmatprep.subr.mxu0 0.0
    %614 = vmatpush1.msra.mxu0 0.0
    %615 = vmatprep.subr.mxu0 0.0
    %616 = vmatpush1.msra.mxu0 0.0
    %617 = vmatprep.subr.mxu0 0.0
    %618 = vmatpush1.msra.mxu0 0.0
    %619 = vmatprep.subr.mxu0 0.0
    %620 = vmatpush1.msra.mxu0 0.0
    %621 = vmatprep.subr.mxu0 0.0
    %622 = vmatpush1.msra.mxu0 0.0
    %623 = vmatprep.subr.mxu0 0.0
    %624 = vmatpush1.msra.mxu0 0.0
    %625 = vmatprep.subr.mxu0 0.0
    %626 = vmatpush1.msra.mxu0 0.0
    %627 = vmatprep.subr.mxu0 0.0
    %628 = vmatpush1.msra.mxu0 0.0
    %629 = vmatprep.subr.mxu0 0.0
    %630 = vmatpush1.msra.mxu0 0.0
    %631 = vmatprep.subr.mxu0 0.0
    %632 = vmatpush1.msra.mxu0 0.0
    %633 = vmatprep.subr.mxu0 0.0
    %634 = vmatpush1.msra.mxu0 0.0
    %635 = vmatprep.subr.mxu0 0.0
    %636 = vmatpush1.msra.mxu0 0.0
    %637 = vmatprep.subr.mxu0 0.0
    %638 = vmatpush1.msra.mxu0 0.0
    %639 = vmatprep.subr.mxu0 0.0
    %640 = vmatpush1.msra.mxu0 0.0
    %641 = vmatprep.subr.mxu0 0.0
    %642 = vmatpush1.msra.mxu0 0.0
    %643 = vmatprep.subr.mxu0 0.0
    %644 = vmatpush1.msra.mxu0 0.0
    %645 = vmatprep.mubr.f32.mxu0 0.0
    %646 = vmatmul.mubr.f32.gmra.mrb[0].mxu0 %v573
    %v647 = vpop.f32.mrb[0].mxu0
    %v648 = vadd.f32 %v570, %v647
    %v649 = vpop.f32.mrb[0].mxu0
    %650 = vmatprep.mubr.f32.mxu0 0.0
    %651 = vmatmul.mubr.f32.gmra.mrb[0].mxu0 %v576
    %v652 = vpop.f32.mrb[0].mxu0
    %v653 = vadd.f32 %v570, %v652
    %v654 = vpop.f32.mrb[0].mxu0
    %655 = vmatprep.mubr.f32.mxu0 0.0
    %656 = vmatmul.mubr.f32.gmra.mrb[0].mxu0 %v579
    %v657 = vpop.f32.mrb[0].mxu0
    %v658 = vadd.f32 %v570, %v657
    %v659 = vpop.f32.mrb[0].mxu0
    %660 = vdwg.mxu0
    %vm661 = vcmp.ge.f32.partialorder %v648, 0.0
    %vm662 = vcmp.ge.f32.partialorder %v653, 0.0
    %vm663 = vcmp.ge.f32.partialorder %v658, 0.0
    %v664 = vmul.f32 %v648, 0.01
    %v665 = vmul.f32 %v653, 0.01
    %v666 = vmul.f32 %v658, 0.01
    %v667 = vsel %vm661, %v648, %v664
    %v668 = vsel %vm662, %v653, %v665
    %v669 = vsel %vm663, %v658, %v666
    %v671 = vsel %vm85, %v667, 0
    %v674 = vsel %vm85, %v668, 0
    %v677 = vsel %vm85, %v669, 0
    %679 = vmatprep.subr.mxu0 0.0
    %680 = vmatpush1.msra.mxu0 %v45
    %681 = vmatprep.subr.mxu0 0.0
    %682 = vmatpush1.msra.mxu0 %v46
    %683 = vmatprep.subr.mxu0 0.0
    %684 = vmatpush1.msra.mxu0 %v47
    %685 = vmatprep.subr.mxu0 0.0
    %686 = vmatpush1.msra.mxu0 %v48
    %687 = vmatprep.subr.mxu0 0.0
    %688 = vmatpush1.msra.mxu0 0.0
    %689 = vmatprep.subr.mxu0 0.0
    %690 = vmatpush1.msra.mxu0 0.0
    %691 = vmatprep.subr.mxu0 0.0
    %692 = vmatpush1.msra.mxu0 0.0
    %693 = vmatprep.subr.mxu0 0.0
    %694 = vmatpush1.msra.mxu0 0.0
    %695 = vmatprep.subr.mxu0 0.0
    %696 = vmatpush1.msra.mxu0 0.0
    %697 = vmatprep.subr.mxu0 0.0
    %698 = vmatpush1.msra.mxu0 0.0
    %699 = vmatprep.subr.mxu0 0.0
    %700 = vmatpush1.msra.mxu0 0.0
    %701 = vmatprep.subr.mxu0 0.0
    %702 = vmatpush1.msra.mxu0 0.0
    %703 = vmatprep.subr.mxu0 0.0
    %704 = vmatpush1.msra.mxu0 0.0
    %705 = vmatprep.subr.mxu0 0.0
    %706 = vmatpush1.msra.mxu0 0.0
    %707 = vmatprep.subr.mxu0 0.0
    %708 = vmatpush1.msra.mxu0 0.0
    %709 = vmatprep.subr.mxu0 0.0
    %710 = vmatpush1.msra.mxu0 0.0
    %711 = vmatprep.subr.mxu0 0.0
    %712 = vmatpush1.msra.mxu0 0.0
    %713 = vmatprep.subr.mxu0 0.0
    %714 = vmatpush1.msra.mxu0 0.0
    %715 = vmatprep.subr.mxu0 0.0
    %716 = vmatpush1.msra.mxu0 0.0
    %717 = vmatprep.subr.mxu0 0.0
    %718 = vmatpush1.msra.mxu0 0.0
    %719 = vmatprep.subr.mxu0 0.0
    %720 = vmatpush1.msra.mxu0 0.0
    %721 = vmatprep.subr.mxu0 0.0
    %722 = vmatpush1.msra.mxu0 0.0
    %723 = vmatprep.subr.mxu0 0.0
    %724 = vmatpush1.msra.mxu0 0.0
    %725 = vmatprep.subr.mxu0 0.0
    %726 = vmatpush1.msra.mxu0 0.0
    %727 = vmatprep.subr.mxu0 0.0
    %728 = vmatpush1.msra.mxu0 0.0
    %729 = vmatprep.subr.mxu0 0.0
    %730 = vmatpush1.msra.mxu0 0.0
    %731 = vmatprep.subr.mxu0 0.0
    %732 = vmatpush1.msra.mxu0 0.0
    %733 = vmatprep.subr.mxu0 0.0
    %734 = vmatpush1.msra.mxu0 0.0
    %735 = vmatprep.subr.mxu0 0.0
    %736 = vmatpush1.msra.mxu0 0.0
    %737 = vmatprep.subr.mxu0 0.0
    %738 = vmatpush1.msra.mxu0 0.0
    %739 = vmatprep.subr.mxu0 0.0
    %740 = vmatpush1.msra.mxu0 0.0
    %741 = vmatprep.subr.mxu0 0.0
    %742 = vmatpush1.msra.mxu0 0.0
    %743 = vmatprep.mubr.f32.mxu0 0.0
    %744 = vmatmul.mubr.f32.gmra.mrb[0].mxu0 %v671
    %v745 = vpop.f32.mrb[0].mxu0
    %v746 = vadd.f32 %v83, %v745
    %v747 = vpop.f32.mrb[0].mxu0
    %748 = vmatprep.mubr.f32.mxu0 0.0
    %749 = vmatmul.mubr.f32.gmra.mrb[0].mxu0 %v674
    %v750 = vpop.f32.mrb[0].mxu0
    %v751 = vadd.f32 %v83, %v750
    %v752 = vpop.f32.mrb[0].mxu0
    %753 = vmatprep.mubr.f32.mxu0 0.0
    %754 = vmatmul.mubr.f32.gmra.mrb[0].mxu0 %v677
    %v755 = vpop.f32.mrb[0].mxu0
    %v756 = vadd.f32 %v83, %v755
    %v757 = vpop.f32.mrb[0].mxu0
    %758 = vdwg.mxu0
    %vm759 = vcmp.ge.f32.partialorder %v746, 0.0
    %vm760 = vcmp.ge.f32.partialorder %v751, 0.0
    %vm761 = vcmp.ge.f32.partialorder %v756, 0.0
    %v762 = vmul.f32 %v746, 0.01
    %v763 = vmul.f32 %v751, 0.01
    %v764 = vmul.f32 %v756, 0.01
    %v765 = vsel %vm759, %v746, %v762
    %v766 = vsel %vm760, %v751, %v763
    %v767 = vsel %vm761, %v756, %v764
    %v769 = vsel %vm85, %v765, 0
    %v772 = vsel %vm85, %v766, 0
    %v775 = vsel %vm85, %v767, 0
    %777 = vmatprep.subr.mxu0 0.0
    %778 = vmatpush1.msra.mxu0 %v50
    %779 = vmatprep.subr.mxu0 0.0
    %780 = vmatpush1.msra.mxu0 %v51
    %781 = vmatprep.subr.mxu0 0.0
    %782 = vmatpush1.msra.mxu0 %v52
    %783 = vmatprep.subr.mxu0 0.0
    %784 = vmatpush1.msra.mxu0 %v53
    %785 = vmatprep.subr.mxu0 0.0
    %786 = vmatpush1.msra.mxu0 0.0
    %787 = vmatprep.subr.mxu0 0.0
    %788 = vmatpush1.msra.mxu0 0.0
    %789 = vmatprep.subr.mxu0 0.0
    %790 = vmatpush1.msra.mxu0 0.0
    %791 = vmatprep.subr.mxu0 0.0
    %792 = vmatpush1.msra.mxu0 0.0
    %793 = vmatprep.subr.mxu0 0.0
    %794 = vmatpush1.msra.mxu0 0.0
    %795 = vmatprep.subr.mxu0 0.0
    %796 = vmatpush1.msra.mxu0 0.0
    %797 = vmatprep.subr.mxu0 0.0
    %798 = vmatpush1.msra.mxu0 0.0
    %799 = vmatprep.subr.mxu0 0.0
    %800 = vmatpush1.msra.mxu0 0.0
    %801 = vmatprep.subr.mxu0 0.0
    %802 = vmatpush1.msra.mxu0 0.0
    %803 = vmatprep.subr.mxu0 0.0
    %804 = vmatpush1.msra.mxu0 0.0
    %805 = vmatprep.subr.mxu0 0.0
    %806 = vmatpush1.msra.mxu0 0.0
    %807 = vmatprep.subr.mxu0 0.0
    %808 = vmatpush1.msra.mxu0 0.0
    %809 = vmatprep.subr.mxu0 0.0
    %810 = vmatpush1.msra.mxu0 0.0
    %811 = vmatprep.subr.mxu0 0.0
    %812 = vmatpush1.msra.mxu0 0.0
    %813 = vmatprep.subr.mxu0 0.0
    %814 = vmatpush1.msra.mxu0 0.0
    %815 = vmatprep.subr.mxu0 0.0
    %816 = vmatpush1.msra.mxu0 0.0
    %817 = vmatprep.subr.mxu0 0.0
    %818 = vmatpush1.msra.mxu0 0.0
    %819 = vmatprep.subr.mxu0 0.0
    %820 = vmatpush1.msra.mxu0 0.0
    %821 = vmatprep.subr.mxu0 0.0
    %822 = vmatpush1.msra.mxu0 0.0
    %823 = vmatprep.subr.mxu0 0.0
    %824 = vmatpush1.msra.mxu0 0.0
    %825 = vmatprep.subr.mxu0 0.0
    %826 = vmatpush1.msra.mxu0 0.0
    %827 = vmatprep.subr.mxu0 0.0
    %828 = vmatpush1.msra.mxu0 0.0
    %829 = vmatprep.subr.mxu0 0.0
    %830 = vmatpush1.msra.mxu0 0.0
    %831 = vmatprep.subr.mxu0 0.0
    %832 = vmatpush1.msra.mxu0 0.0
    %833 = vmatprep.subr.mxu0 0.0
    %834 = vmatpush1.msra.mxu0 0.0
    %835 = vmatprep.subr.mxu0 0.0
    %836 = vmatpush1.msra.mxu0 0.0
    %837 = vmatprep.subr.mxu0 0.0
    %838 = vmatpush1.msra.mxu0 0.0
    %839 = vmatprep.subr.mxu0 0.0
    %840 = vmatpush1.msra.mxu0 0.0
    %841 = vmatprep.mubr.f32.mxu0 0.0
    %842 = vmatmul.mubr.f32.gmra.mrb[0].mxu0 %v769
    %v843 = vpop.f32.mrb[0].mxu0
    %v844 = vadd.f32 %v188, %v843
    %v845 = vpop.f32.mrb[0].mxu0
    %846 = vmatprep.mubr.f32.mxu0 0.0
    %847 = vmatmul.mubr.f32.gmra.mrb[0].mxu0 %v772
    %v848 = vpop.f32.mrb[0].mxu0
    %v849 = vadd.f32 %v188, %v848
    %v850 = vpop.f32.mrb[0].mxu0
    %851 = vmatprep.mubr.f32.mxu0 0.0
    %852 = vmatmul.mubr.f32.gmra.mrb[0].mxu0 %v775
    %v853 = vpop.f32.mrb[0].mxu0
    %v854 = vadd.f32 %v188, %v853
    %v855 = vpop.f32.mrb[0].mxu0
    %856 = vdwg.mxu0
    %vm857 = vcmp.ge.f32.partialorder %v844, 0.0
    %vm858 = vcmp.ge.f32.partialorder %v849, 0.0
    %vm859 = vcmp.ge.f32.partialorder %v854, 0.0
    %v860 = vmul.f32 %v844, 0.01
    %v861 = vmul.f32 %v849, 0.01
    %v862 = vmul.f32 %v854, 0.01
    %v863 = vsel %vm857, %v844, %v860
    %v864 = vsel %vm858, %v849, %v861
    %v865 = vsel %vm859, %v854, %v862
    %866 = vmatprep.subr.mxu0 0.0
    %867 = vmatpush1.msra.mxu0 %v863
    %868 = vmatprep.subr.mxu0 0.0
    %869 = vmatpush1.msra.mxu0 %v864
    %870 = vmatprep.subr.mxu0 0.0
    %871 = vmatpush1.msra.mxu0 %v865
    %872 = vmatprep.subr.mxu0 0.0
    %873 = vmatpush1.msra.mxu0 0.0
    %874 = vmatprep.subr.mxu0 0.0
    %875 = vmatpush1.msra.mxu0 0.0
    %876 = vmatprep.subr.mxu0 0.0
    %877 = vmatpush1.msra.mxu0 0.0
    %878 = vmatprep.subr.mxu0 0.0
    %879 = vmatpush1.msra.mxu0 0.0
    %880 = vmatprep.subr.mxu0 0.0
    %881 = vmatpush1.msra.mxu0 0.0
    %882 = vmatprep.subr.mxu0 0.0
    %883 = vmatpush1.msra.mxu0 0.0
    %884 = vmatprep.subr.mxu0 0.0
    %885 = vmatpush1.msra.mxu0 0.0
    %886 = vmatprep.subr.mxu0 0.0
    %887 = vmatpush1.msra.mxu0 0.0
    %888 = vmatprep.subr.mxu0 0.0
    %889 = vmatpush1.msra.mxu0 0.0
    %890 = vmatprep.subr.mxu0 0.0
    %891 = vmatpush1.msra.mxu0 0.0
    %892 = vmatprep.subr.mxu0 0.0
    %893 = vmatpush1.msra.mxu0 0.0
    %894 = vmatprep.subr.mxu0 0.0
    %895 = vmatpush1.msra.mxu0 0.0
    %896 = vmatprep.subr.mxu0 0.0
    %897 = vmatpush1.msra.mxu0 0.0
    %898 = vmatprep.subr.mxu0 0.0
    %899 = vmatpush1.msra.mxu0 0.0
    %900 = vmatprep.subr.mxu0 0.0
    %901 = vmatpush1.msra.mxu0 0.0
    %902 = vmatprep.subr.mxu0 0.0
    %903 = vmatpush1.msra.mxu0 0.0
    %904 = vmatprep.subr.mxu0 0.0
    %905 = vmatpush1.msra.mxu0 0.0
    %906 = vmatprep.subr.mxu0 0.0
    %907 = vmatpush1.msra.mxu0 0.0
    %908 = vmatprep.subr.mxu0 0.0
    %909 = vmatpush1.msra.mxu0 0.0
    %910 = vmatprep.subr.mxu0 0.0
    %911 = vmatpush1.msra.mxu0 0.0
    %912 = vmatprep.subr.mxu0 0.0
    %913 = vmatpush1.msra.mxu0 0.0
    %914 = vmatprep.subr.mxu0 0.0
    %915 = vmatpush1.msra.mxu0 0.0
    %916 = vmatprep.subr.mxu0 0.0
    %917 = vmatpush1.msra.mxu0 0.0
    %918 = vmatprep.subr.mxu0 0.0
    %919 = vmatpush1.msra.mxu0 0.0
    %920 = vmatprep.subr.mxu0 0.0
    %921 = vmatpush1.msra.mxu0 0.0
    %922 = vmatprep.subr.mxu0 0.0
    %923 = vmatpush1.msra.mxu0 0.0
    %924 = vmatprep.subr.mxu0 0.0
    %925 = vmatpush1.msra.mxu0 0.0
    %926 = vmatprep.subr.mxu0 0.0
    %927 = vmatpush1.msra.mxu0 0.0
    %928 = vmatprep.subr.mxu0 0.0
    %929 = vmatpush1.msra.mxu0 0.0
    %930 = vmatprep.mubr.f32.mxu0 0.0
    %931 = vmatmul.mubr.f32.gmra.mrb[0].mxu0 %v290
    %v932 = vpop.f32.mrb[0].mxu0
    %v933 = vadd.f32 0.0, %v932
    %v934 = vpop.f32.mrb[0].mxu0
    %935 = vmatprep.mubr.f32.mxu0 0.0
    %936 = vmatmul.mubr.f32.gmra.mrb[0].mxu0 %v293
    %v937 = vpop.f32.mrb[0].mxu0
    %v938 = vadd.f32 0.0, %v937
    %v939 = vpop.f32.mrb[0].mxu0
    %940 = vmatprep.mubr.f32.mxu0 0.0
    %941 = vmatmul.mubr.f32.gmra.mrb[0].mxu0 %v296
    %v942 = vpop.f32.mrb[0].mxu0
    %v943 = vadd.f32 0.0, %v942
    %v944 = vpop.f32.mrb[0].mxu0
    %945 = vdwg.mxu0
    %v947 = vsel %vm378, %v933, 0
    %v950 = vsel %vm378, %v938, 0
    %v953 = vsel %vm378, %v943, 0
    %955 = vmatprep.subr.mxu0 0.0
    %956 = vmatpush1.msra.mxu0 %v59
    %957 = vmatprep.subr.mxu0 0.0
    %958 = vmatpush1.msra.mxu0 %v60
    %959 = vmatprep.subr.mxu0 0.0
    %960 = vmatpush1.msra.mxu0 %v61
    %961 = vmatprep.subr.mxu0 0.0
    %962 = vmatpush1.msra.mxu0 %v62
    %963 = vmatprep.subr.mxu0 0.0
    %964 = vmatpush1.msra.mxu0 %v63
    %965 = vmatprep.subr.mxu0 0.0
    %966 = vmatpush1.msra.mxu0 %v64
    %967 = vmatprep.subr.mxu0 0.0
    %968 = vmatpush1.msra.mxu0 %v65
    %969 = vmatprep.subr.mxu0 0.0
    %970 = vmatpush1.msra.mxu0 %v66
    %971 = vmatprep.subr.mxu0 0.0
    %972 = vmatpush1.msra.mxu0 0.0
    %973 = vmatprep.subr.mxu0 0.0
    %974 = vmatpush1.msra.mxu0 0.0
    %975 = vmatprep.subr.mxu0 0.0
    %976 = vmatpush1.msra.mxu0 0.0
    %977 = vmatprep.subr.mxu0 0.0
    %978 = vmatpush1.msra.mxu0 0.0
    %979 = vmatprep.subr.mxu0 0.0
    %980 = vmatpush1.msra.mxu0 0.0
    %981 = vmatprep.subr.mxu0 0.0
    %982 = vmatpush1.msra.mxu0 0.0
    %983 = vmatprep.subr.mxu0 0.0
    %984 = vmatpush1.msra.mxu0 0.0
    %985 = vmatprep.subr.mxu0 0.0
    %986 = vmatpush1.msra.mxu0 0.0
    %987 = vmatprep.subr.mxu0 0.0
    %988 = vmatpush1.msra.mxu0 0.0
    %989 = vmatprep.subr.mxu0 0.0
    %990 = vmatpush1.msra.mxu0 0.0
    %991 = vmatprep.subr.mxu0 0.0
    %992 = vmatpush1.msra.mxu0 0.0
    %993 = vmatprep.subr.mxu0 0.0
    %994 = vmatpush1.msra.mxu0 0.0
    %995 = vmatprep.subr.mxu0 0.0
    %996 = vmatpush1.msra.mxu0 0.0
    %997 = vmatprep.subr.mxu0 0.0
    %998 = vmatpush1.msra.mxu0 0.0
    %999 = vmatprep.subr.mxu0 0.0
    %1000 = vmatpush1.msra.mxu0 0.0
    %1001 = vmatprep.subr.mxu0 0.0
    %1002 = vmatpush1.msra.mxu0 0.0
    %1003 = vmatprep.subr.mxu0 0.0
    %1004 = vmatpush1.msra.mxu0 0.0
    %1005 = vmatprep.subr.mxu0 0.0
    %1006 = vmatpush1.msra.mxu0 0.0
    %1007 = vmatprep.subr.mxu0 0.0
    %1008 = vmatpush1.msra.mxu0 0.0
    %1009 = vmatprep.subr.mxu0 0.0
    %1010 = vmatpush1.msra.mxu0 0.0
    %1011 = vmatprep.subr.mxu0 0.0
    %1012 = vmatpush1.msra.mxu0 0.0
    %1013 = vmatprep.subr.mxu0 0.0
    %1014 = vmatpush1.msra.mxu0 0.0
    %1015 = vmatprep.subr.mxu0 0.0
    %1016 = vmatpush1.msra.mxu0 0.0
    %1017 = vmatprep.subr.mxu0 0.0
    %1018 = vmatpush1.msra.mxu0 0.0
    %1019 = vmatprep.mubr.f32.mxu0 0.0
    %1020 = vmatmul.mubr.f32.gmra.mrb[0].mxu0 %v947
    %v1021 = vpop.f32.mrb[0].mxu0
    %v1022 = vadd.f32 0.0, %v1021
    %v1023 = vpop.f32.mrb[0].mxu0
    %1024 = vmatprep.mubr.f32.mxu0 0.0
    %1025 = vmatmul.mubr.f32.gmra.mrb[0].mxu0 %v950
    %v1026 = vpop.f32.mrb[0].mxu0
    %v1027 = vadd.f32 0.0, %v1026
    %v1028 = vpop.f32.mrb[0].mxu0
    %1029 = vmatprep.mubr.f32.mxu0 0.0
    %1030 = vmatmul.mubr.f32.gmra.mrb[0].mxu0 %v953
    %v1031 = vpop.f32.mrb[0].mxu0
    %v1032 = vadd.f32 0.0, %v1031
    %v1033 = vpop.f32.mrb[0].mxu0
    %1034 = vdwg.mxu0
    %1035 = vmatprep.subr.mxu0 0.0
    %1036 = vmatpush1.msra.mxu0 %v55
    %1037 = vmatprep.subr.mxu0 0.0
    %1038 = vmatpush1.msra.mxu0 %v56
    %1039 = vmatprep.subr.mxu0 0.0
    %1040 = vmatpush1.msra.mxu0 %v57
    %1041 = vmatprep.subr.mxu0 0.0
    %1042 = vmatpush1.msra.mxu0 %v58
    %1043 = vmatprep.subr.mxu0 0.0
    %1044 = vmatpush1.msra.mxu0 0.0
    %1045 = vmatprep.subr.mxu0 0.0
    %1046 = vmatpush1.msra.mxu0 0.0
    %1047 = vmatprep.subr.mxu0 0.0
    %1048 = vmatpush1.msra.mxu0 0.0
    %1049 = vmatprep.subr.mxu0 0.0
    %1050 = vmatpush1.msra.mxu0 0.0
    %1051 = vmatprep.subr.mxu0 0.0
    %1052 = vmatpush1.msra.mxu0 0.0
    %1053 = vmatprep.subr.mxu0 0.0
    %1054 = vmatpush1.msra.mxu0 0.0
    %1055 = vmatprep.subr.mxu0 0.0
    %1056 = vmatpush1.msra.mxu0 0.0
    %1057 = vmatprep.subr.mxu0 0.0
    %1058 = vmatpush1.msra.mxu0 0.0
    %1059 = vmatprep.subr.mxu0 0.0
    %1060 = vmatpush1.msra.mxu0 0.0
    %1061 = vmatprep.subr.mxu0 0.0
    %1062 = vmatpush1.msra.mxu0 0.0
    %1063 = vmatprep.subr.mxu0 0.0
    %1064 = vmatpush1.msra.mxu0 0.0
    %1065 = vmatprep.subr.mxu0 0.0
    %1066 = vmatpush1.msra.mxu0 0.0
    %1067 = vmatprep.subr.mxu0 0.0
    %1068 = vmatpush1.msra.mxu0 0.0
    %1069 = vmatprep.subr.mxu0 0.0
    %1070 = vmatpush1.msra.mxu0 0.0
    %1071 = vmatprep.subr.mxu0 0.0
    %1072 = vmatpush1.msra.mxu0 0.0
    %1073 = vmatprep.subr.mxu0 0.0
    %1074 = vmatpush1.msra.mxu0 0.0
    %1075 = vmatprep.subr.mxu0 0.0
    %1076 = vmatpush1.msra.mxu0 0.0
    %1077 = vmatprep.subr.mxu0 0.0
    %1078 = vmatpush1.msra.mxu0 0.0
    %1079 = vmatprep.subr.mxu0 0.0
    %1080 = vmatpush1.msra.mxu0 0.0
    %1081 = vmatprep.subr.mxu0 0.0
    %1082 = vmatpush1.msra.mxu0 0.0
    %1083 = vmatprep.subr.mxu0 0.0
    %1084 = vmatpush1.msra.mxu0 0.0
    %1085 = vmatprep.subr.mxu0 0.0
    %1086 = vmatpush1.msra.mxu0 0.0
    %1087 = vmatprep.subr.mxu0 0.0
    %1088 = vmatpush1.msra.mxu0 0.0
    %1089 = vmatprep.subr.mxu0 0.0
    %1090 = vmatpush1.msra.mxu0 0.0
    %1091 = vmatprep.subr.mxu0 0.0
    %1092 = vmatpush1.msra.mxu0 0.0
    %1093 = vmatprep.subr.mxu0 0.0
    %1094 = vmatpush1.msra.mxu0 0.0
    %1095 = vmatprep.subr.mxu0 0.0
    %1096 = vmatpush1.msra.mxu0 0.0
    %1097 = vmatprep.subr.mxu0 0.0
    %1098 = vmatpush1.msra.mxu0 0.0
    %1099 = vmatprep.mubr.f32.mxu0 0.0
    %1100 = vmatmul.mubr.f32.gmra.mrb[0].mxu0 %v671
    %v1101 = vpop.f32.mrb[0].mxu0
    %v1102 = vadd.f32 %v1022, %v1101
    %v1103 = vpop.f32.mrb[0].mxu0
    %1104 = vmatprep.mubr.f32.mxu0 0.0
    %1105 = vmatmul.mubr.f32.gmra.mrb[0].mxu0 %v674
    %v1106 = vpop.f32.mrb[0].mxu0
    %v1107 = vadd.f32 %v1027, %v1106
    %v1108 = vpop.f32.mrb[0].mxu0
    %1109 = vmatprep.mubr.f32.mxu0 0.0
    %1110 = vmatmul.mubr.f32.gmra.mrb[0].mxu0 %v677
    %v1111 = vpop.f32.mrb[0].mxu0
    %v1112 = vadd.f32 %v1032, %v1111
    %v1113 = vpop.f32.mrb[0].mxu0
    %1114 = vdwg.mxu0
    %v1115 = vadd.f32 %v1102, %v552
    %v1116 = vadd.f32 %v1107, %v552
    %v1117 = vadd.f32 %v1112, %v552
    %vm1118 = vcmp.ge.f32.partialorder %v1115, 0.0
    %vm1119 = vcmp.ge.f32.partialorder %v1116, 0.0
    %vm1120 = vcmp.ge.f32.partialorder %v1117, 0.0
    %v1121 = vmul.f32 %v1115, 0.01
    %v1122 = vmul.f32 %v1116, 0.01
    %v1123 = vmul.f32 %v1117, 0.01
    %v1124 = vsel %vm1118, %v1115, %v1121
    %v1125 = vsel %vm1119, %v1116, %v1122
    %v1126 = vsel %vm1120, %v1117, %v1123
    %v1128 = vsel %vm85, %v1124, 0
    %v1131 = vsel %vm85, %v1125, 0
    %v1134 = vsel %vm85, %v1126, 0
    %1136 = vmatprep.subr.mxu0 0.0
    %1137 = vmatpush1.msra.mxu0 %v68
    %1138 = vmatprep.subr.mxu0 0.0
    %1139 = vmatpush1.msra.mxu0 %v69
    %1140 = vmatprep.subr.mxu0 0.0
    %1141 = vmatpush1.msra.mxu0 %v70
    %1142 = vmatprep.subr.mxu0 0.0
    %1143 = vmatpush1.msra.mxu0 %v71
    %1144 = vmatprep.subr.mxu0 0.0
    %1145 = vmatpush1.msra.mxu0 0.0
    %1146 = vmatprep.subr.mxu0 0.0
    %1147 = vmatpush1.msra.mxu0 0.0
    %1148 = vmatprep.subr.mxu0 0.0
    %1149 = vmatpush1.msra.mxu0 0.0
    %1150 = vmatprep.subr.mxu0 0.0
    %1151 = vmatpush1.msra.mxu0 0.0
    %1152 = vmatprep.subr.mxu0 0.0
    %1153 = vmatpush1.msra.mxu0 0.0
    %1154 = vmatprep.subr.mxu0 0.0
    %1155 = vmatpush1.msra.mxu0 0.0
    %1156 = vmatprep.subr.mxu0 0.0
    %1157 = vmatpush1.msra.mxu0 0.0
    %1158 = vmatprep.subr.mxu0 0.0
    %1159 = vmatpush1.msra.mxu0 0.0
    %1160 = vmatprep.subr.mxu0 0.0
    %1161 = vmatpush1.msra.mxu0 0.0
    %1162 = vmatprep.subr.mxu0 0.0
    %1163 = vmatpush1.msra.mxu0 0.0
    %1164 = vmatprep.subr.mxu0 0.0
    %1165 = vmatpush1.msra.mxu0 0.0
    %1166 = vmatprep.subr.mxu0 0.0
    %1167 = vmatpush1.msra.mxu0 0.0
    %1168 = vmatprep.subr.mxu0 0.0
    %1169 = vmatpush1.msra.mxu0 0.0
    %1170 = vmatprep.subr.mxu0 0.0
    %1171 = vmatpush1.msra.mxu0 0.0
    %1172 = vmatprep.subr.mxu0 0.0
    %1173 = vmatpush1.msra.mxu0 0.0
    %1174 = vmatprep.subr.mxu0 0.0
    %1175 = vmatpush1.msra.mxu0 0.0
    %1176 = vmatprep.subr.mxu0 0.0
    %1177 = vmatpush1.msra.mxu0 0.0
    %1178 = vmatprep.subr.mxu0 0.0
    %1179 = vmatpush1.msra.mxu0 0.0
    %1180 = vmatprep.subr.mxu0 0.0
    %1181 = vmatpush1.msra.mxu0 0.0
    %1182 = vmatprep.subr.mxu0 0.0
    %1183 = vmatpush1.msra.mxu0 0.0
    %1184 = vmatprep.subr.mxu0 0.0
    %1185 = vmatpush1.msra.mxu0 0.0
    %1186 = vmatprep.subr.mxu0 0.0
    %1187 = vmatpush1.msra.mxu0 0.0
    %1188 = vmatprep.subr.mxu0 0.0
    %1189 = vmatpush1.msra.mxu0 0.0
    %1190 = vmatprep.subr.mxu0 0.0
    %1191 = vmatpush1.msra.mxu0 0.0
    %1192 = vmatprep.subr.mxu0 0.0
    %1193 = vmatpush1.msra.mxu0 0.0
    %1194 = vmatprep.subr.mxu0 0.0
    %1195 = vmatpush1.msra.mxu0 0.0
    %1196 = vmatprep.subr.mxu0 0.0
    %1197 = vmatpush1.msra.mxu0 0.0
    %1198 = vmatprep.subr.mxu0 0.0
    %1199 = vmatpush1.msra.mxu0 0.0
    %1200 = vmatprep.mubr.f32.mxu0 0.0
    %1201 = vmatmul.mubr.f32.gmra.mrb[0].mxu0 %v1128
    %v1202 = vpop.f32.mrb[0].mxu0
    %v1203 = vadd.f32 %v570, %v1202
    %v1204 = vpop.f32.mrb[0].mxu0
    %1205 = vmatprep.mubr.f32.mxu0 0.0
    %1206 = vmatmul.mubr.f32.gmra.mrb[0].mxu0 %v1131
    %v1207 = vpop.f32.mrb[0].mxu0
    %v1208 = vadd.f32 %v570, %v1207
    %v1209 = vpop.f32.mrb[0].mxu0
    %1210 = vmatprep.mubr.f32.mxu0 0.0
    %1211 = vmatmul.mubr.f32.gmra.mrb[0].mxu0 %v1134
    %v1212 = vpop.f32.mrb[0].mxu0
    %v1213 = vadd.f32 %v570, %v1212
    %v1214 = vpop.f32.mrb[0].mxu0
    %1215 = vdwg.mxu0
    %vm1216 = vcmp.ge.f32.partialorder %v1203, 0.0
    %vm1217 = vcmp.ge.f32.partialorder %v1208, 0.0
    %vm1218 = vcmp.ge.f32.partialorder %v1213, 0.0
    %v1219 = vmul.f32 %v1203, 0.01
    %v1220 = vmul.f32 %v1208, 0.01
    %v1221 = vmul.f32 %v1213, 0.01
    %v1222 = vsel %vm1216, %v1203, %v1219
    %v1223 = vsel %vm1217, %v1208, %v1220
    %v1224 = vsel %vm1218, %v1213, %v1221
    %v1226 = vsel %vm85, %v1222, 0
    %v1229 = vsel %vm85, %v1223, 0
    %v1232 = vsel %vm85, %v1224, 0
    %1234 = vmatprep.subr.mxu0 0.0
    %1235 = vmatpush1.msra.mxu0 %v45
    %1236 = vmatprep.subr.mxu0 0.0
    %1237 = vmatpush1.msra.mxu0 %v46
    %1238 = vmatprep.subr.mxu0 0.0
    %1239 = vmatpush1.msra.mxu0 %v47
    %1240 = vmatprep.subr.mxu0 0.0
    %1241 = vmatpush1.msra.mxu0 %v48
    %1242 = vmatprep.subr.mxu0 0.0
    %1243 = vmatpush1.msra.mxu0 0.0
    %1244 = vmatprep.subr.mxu0 0.0
    %1245 = vmatpush1.msra.mxu0 0.0
    %1246 = vmatprep.subr.mxu0 0.0
    %1247 = vmatpush1.msra.mxu0 0.0
    %1248 = vmatprep.subr.mxu0 0.0
    %1249 = vmatpush1.msra.mxu0 0.0
    %1250 = vmatprep.subr.mxu0 0.0
    %1251 = vmatpush1.msra.mxu0 0.0
    %1252 = vmatprep.subr.mxu0 0.0
    %1253 = vmatpush1.msra.mxu0 0.0
    %1254 = vmatprep.subr.mxu0 0.0
    %1255 = vmatpush1.msra.mxu0 0.0
    %1256 = vmatprep.subr.mxu0 0.0
    %1257 = vmatpush1.msra.mxu0 0.0
    %1258 = vmatprep.subr.mxu0 0.0
    %1259 = vmatpush1.msra.mxu0 0.0
    %1260 = vmatprep.subr.mxu0 0.0
    %1261 = vmatpush1.msra.mxu0 0.0
    %1262 = vmatprep.subr.mxu0 0.0
    %1263 = vmatpush1.msra.mxu0 0.0
    %1264 = vmatprep.subr.mxu0 0.0
    %1265 = vmatpush1.msra.mxu0 0.0
    %1266 = vmatprep.subr.mxu0 0.0
    %1267 = vmatpush1.msra.mxu0 0.0
    %1268 = vmatprep.subr.mxu0 0.0
    %1269 = vmatpush1.msra.mxu0 0.0
    %1270 = vmatprep.subr.mxu0 0.0
    %1271 = vmatpush1.msra.mxu0 0.0
    %1272 = vmatprep.subr.mxu0 0.0
    %1273 = vmatpush1.msra.mxu0 0.0
    %1274 = vmatprep.subr.mxu0 0.0
    %1275 = vmatpush1.msra.mxu0 0.0
    %1276 = vmatprep.subr.mxu0 0.0
    %1277 = vmatpush1.msra.mxu0 0.0
    %1278 = vmatprep.subr.mxu0 0.0
    %1279 = vmatpush1.msra.mxu0 0.0
    %1280 = vmatprep.subr.mxu0 0.0
    %1281 = vmatpush1.msra.mxu0 0.0
    %1282 = vmatprep.subr.mxu0 0.0
    %1283 = vmatpush1.msra.mxu0 0.0
    %1284 = vmatprep.subr.mxu0 0.0
    %1285 = vmatpush1.msra.mxu0 0.0
    %1286 = vmatprep.subr.mxu0 0.0
    %1287 = vmatpush1.msra.mxu0 0.0
    %1288 = vmatprep.subr.mxu0 0.0
    %1289 = vmatpush1.msra.mxu0 0.0
    %1290 = vmatprep.subr.mxu0 0.0
    %1291 = vmatpush1.msra.mxu0 0.0
    %1292 = vmatprep.subr.mxu0 0.0
    %1293 = vmatpush1.msra.mxu0 0.0
    %1294 = vmatprep.subr.mxu0 0.0
    %1295 = vmatpush1.msra.mxu0 0.0
    %1296 = vmatprep.subr.mxu0 0.0
    %1297 = vmatpush1.msra.mxu0 0.0
    %1298 = vmatprep.mubr.f32.mxu0 0.0
    %1299 = vmatmul.mubr.f32.gmra.mrb[0].mxu0 %v1226
    %v1300 = vpop.f32.mrb[0].mxu0
    %v1301 = vadd.f32 %v83, %v1300
    %v1302 = vpop.f32.mrb[0].mxu0
    %1303 = vmatprep.mubr.f32.mxu0 0.0
    %1304 = vmatmul.mubr.f32.gmra.mrb[0].mxu0 %v1229
    %v1305 = vpop.f32.mrb[0].mxu0
    %v1306 = vadd.f32 %v83, %v1305
    %v1307 = vpop.f32.mrb[0].mxu0
    %1308 = vmatprep.mubr.f32.mxu0 0.0
    %1309 = vmatmul.mubr.f32.gmra.mrb[0].mxu0 %v1232
    %v1310 = vpop.f32.mrb[0].mxu0
    %v1311 = vadd.f32 %v83, %v1310
    %v1312 = vpop.f32.mrb[0].mxu0
    %1313 = vdwg.mxu0
    %vm1314 = vcmp.ge.f32.partialorder %v1301, 0.0
    %vm1315 = vcmp.ge.f32.partialorder %v1306, 0.0
    %vm1316 = vcmp.ge.f32.partialorder %v1311, 0.0
    %v1317 = vmul.f32 %v1301, 0.01
    %v1318 = vmul.f32 %v1306, 0.01
    %v1319 = vmul.f32 %v1311, 0.01
    %v1320 = vsel %vm1314, %v1301, %v1317
    %v1321 = vsel %vm1315, %v1306, %v1318
    %v1322 = vsel %vm1316, %v1311, %v1319
    %v1324 = vsel %vm85, %v1320, 0
    %v1327 = vsel %vm85, %v1321, 0
    %v1330 = vsel %vm85, %v1322, 0
    %1332 = vmatprep.subr.mxu0 0.0
    %1333 = vmatpush1.msra.mxu0 %v50
    %1334 = vmatprep.subr.mxu0 0.0
    %1335 = vmatpush1.msra.mxu0 %v51
    %1336 = vmatprep.subr.mxu0 0.0
    %1337 = vmatpush1.msra.mxu0 %v52
    %1338 = vmatprep.subr.mxu0 0.0
    %1339 = vmatpush1.msra.mxu0 %v53
    %1340 = vmatprep.subr.mxu0 0.0
    %1341 = vmatpush1.msra.mxu0 0.0
    %1342 = vmatprep.subr.mxu0 0.0
    %1343 = vmatpush1.msra.mxu0 0.0
    %1344 = vmatprep.subr.mxu0 0.0
    %1345 = vmatpush1.msra.mxu0 0.0
    %1346 = vmatprep.subr.mxu0 0.0
    %1347 = vmatpush1.msra.mxu0 0.0
    %1348 = vmatprep.subr.mxu0 0.0
    %1349 = vmatpush1.msra.mxu0 0.0
    %1350 = vmatprep.subr.mxu0 0.0
    %1351 = vmatpush1.msra.mxu0 0.0
    %1352 = vmatprep.subr.mxu0 0.0
    %1353 = vmatpush1.msra.mxu0 0.0
    %1354 = vmatprep.subr.mxu0 0.0
    %1355 = vmatpush1.msra.mxu0 0.0
    %1356 = vmatprep.subr.mxu0 0.0
    %1357 = vmatpush1.msra.mxu0 0.0
    %1358 = vmatprep.subr.mxu0 0.0
    %1359 = vmatpush1.msra.mxu0 0.0
    %1360 = vmatprep.subr.mxu0 0.0
    %1361 = vmatpush1.msra.mxu0 0.0
    %1362 = vmatprep.subr.mxu0 0.0
    %1363 = vmatpush1.msra.mxu0 0.0
    %1364 = vmatprep.subr.mxu0 0.0
    %1365 = vmatpush1.msra.mxu0 0.0
    %1366 = vmatprep.subr.mxu0 0.0
    %1367 = vmatpush1.msra.mxu0 0.0
    %1368 = vmatprep.subr.mxu0 0.0
    %1369 = vmatpush1.msra.mxu0 0.0
    %1370 = vmatprep.subr.mxu0 0.0
    %1371 = vmatpush1.msra.mxu0 0.0
    %1372 = vmatprep.subr.mxu0 0.0
    %1373 = vmatpush1.msra.mxu0 0.0
    %1374 = vmatprep.subr.mxu0 0.0
    %1375 = vmatpush1.msra.mxu0 0.0
    %1376 = vmatprep.subr.mxu0 0.0
    %1377 = vmatpush1.msra.mxu0 0.0
    %1378 = vmatprep.subr.mxu0 0.0
    %1379 = vmatpush1.msra.mxu0 0.0
    %1380 = vmatprep.subr.mxu0 0.0
    %1381 = vmatpush1.msra.mxu0 0.0
    %1382 = vmatprep.subr.mxu0 0.0
    %1383 = vmatpush1.msra.mxu0 0.0
    %1384 = vmatprep.subr.mxu0 0.0
    %1385 = vmatpush1.msra.mxu0 0.0
    %1386 = vmatprep.subr.mxu0 0.0
    %1387 = vmatpush1.msra.mxu0 0.0
    %1388 = vmatprep.subr.mxu0 0.0
    %1389 = vmatpush1.msra.mxu0 0.0
    %1390 = vmatprep.subr.mxu0 0.0
    %1391 = vmatpush1.msra.mxu0 0.0
    %1392 = vmatprep.subr.mxu0 0.0
    %1393 = vmatpush1.msra.mxu0 0.0
    %1394 = vmatprep.subr.mxu0 0.0
    %1395 = vmatpush1.msra.mxu0 0.0
    %1396 = vmatprep.mubr.f32.mxu0 0.0
    %1397 = vmatmul.mubr.f32.gmra.mrb[0].mxu0 %v1324
    %v1398 = vpop.f32.mrb[0].mxu0
    %v1399 = vadd.f32 %v188, %v1398
    %v1400 = vpop.f32.mrb[0].mxu0
    %1401 = vmatprep.mubr.f32.mxu0 0.0
    %1402 = vmatmul.mubr.f32.gmra.mrb[0].mxu0 %v1327
    %v1403 = vpop.f32.mrb[0].mxu0
    %v1404 = vadd.f32 %v188, %v1403
    %v1405 = vpop.f32.mrb[0].mxu0
    %1406 = vmatprep.mubr.f32.mxu0 0.0
    %1407 = vmatmul.mubr.f32.gmra.mrb[0].mxu0 %v1330
    %v1408 = vpop.f32.mrb[0].mxu0
    %v1409 = vadd.f32 %v188, %v1408
    %v1410 = vpop.f32.mrb[0].mxu0
    %1411 = vdwg.mxu0
    %vm1412 = vcmp.ge.f32.partialorder %v1399, 0.0
    %vm1413 = vcmp.ge.f32.partialorder %v1404, 0.0
    %vm1414 = vcmp.ge.f32.partialorder %v1409, 0.0
    %v1415 = vmul.f32 %v1399, 0.01
    %v1416 = vmul.f32 %v1404, 0.01
    %v1417 = vmul.f32 %v1409, 0.01
    %v1418 = vsel %vm1412, %v1399, %v1415
    %v1419 = vsel %vm1413, %v1404, %v1416
    %v1420 = vsel %vm1414, %v1409, %v1417
    %1421 = vmatprep.subr.mxu0 0.0
    %1422 = vmatpush1.msra.mxu0 %v1418
    %1423 = vmatprep.subr.mxu0 0.0
    %1424 = vmatpush1.msra.mxu0 %v1419
    %1425 = vmatprep.subr.mxu0 0.0
    %1426 = vmatpush1.msra.mxu0 %v1420
    %1427 = vmatprep.subr.mxu0 0.0
    %1428 = vmatpush1.msra.mxu0 0.0
    %1429 = vmatprep.subr.mxu0 0.0
    %1430 = vmatpush1.msra.mxu0 0.0
    %1431 = vmatprep.subr.mxu0 0.0
    %1432 = vmatpush1.msra.mxu0 0.0
    %1433 = vmatprep.subr.mxu0 0.0
    %1434 = vmatpush1.msra.mxu0 0.0
    %1435 = vmatprep.subr.mxu0 0.0
    %1436 = vmatpush1.msra.mxu0 0.0
    %1437 = vmatprep.subr.mxu0 0.0
    %1438 = vmatpush1.msra.mxu0 0.0
    %1439 = vmatprep.subr.mxu0 0.0
    %1440 = vmatpush1.msra.mxu0 0.0
    %1441 = vmatprep.subr.mxu0 0.0
    %1442 = vmatpush1.msra.mxu0 0.0
    %1443 = vmatprep.subr.mxu0 0.0
    %1444 = vmatpush1.msra.mxu0 0.0
    %1445 = vmatprep.subr.mxu0 0.0
    %1446 = vmatpush1.msra.mxu0 0.0
    %1447 = vmatprep.subr.mxu0 0.0
    %1448 = vmatpush1.msra.mxu0 0.0
    %1449 = vmatprep.subr.mxu0 0.0
    %1450 = vmatpush1.msra.mxu0 0.0
    %1451 = vmatprep.subr.mxu0 0.0
    %1452 = vmatpush1.msra.mxu0 0.0
    %1453 = vmatprep.subr.mxu0 0.0
    %1454 = vmatpush1.msra.mxu0 0.0
    %1455 = vmatprep.subr.mxu0 0.0
    %1456 = vmatpush1.msra.mxu0 0.0
    %1457 = vmatprep.subr.mxu0 0.0
    %1458 = vmatpush1.msra.mxu0 0.0
    %1459 = vmatprep.subr.mxu0 0.0
    %1460 = vmatpush1.msra.mxu0 0.0
    %1461 = vmatprep.subr.mxu0 0.0
    %1462 = vmatpush1.msra.mxu0 0.0
    %1463 = vmatprep.subr.mxu0 0.0
    %1464 = vmatpush1.msra.mxu0 0.0
    %1465 = vmatprep.subr.mxu0 0.0
    %1466 = vmatpush1.msra.mxu0 0.0
    %1467 = vmatprep.subr.mxu0 0.0
    %1468 = vmatpush1.msra.mxu0 0.0
    %1469 = vmatprep.subr.mxu0 0.0
    %1470 = vmatpush1.msra.mxu0 0.0
    %1471 = vmatprep.subr.mxu0 0.0
    %1472 = vmatpush1.msra.mxu0 0.0
    %1473 = vmatprep.subr.mxu0 0.0
    %1474 = vmatpush1.msra.mxu0 0.0
    %1475 = vmatprep.subr.mxu0 0.0
    %1476 = vmatpush1.msra.mxu0 0.0
    %1477 = vmatprep.subr.mxu0 0.0
    %1478 = vmatpush1.msra.mxu0 0.0
    %1479 = vmatprep.subr.mxu0 0.0
    %1480 = vmatpush1.msra.mxu0 0.0
    %1481 = vmatprep.subr.mxu0 0.0
    %1482 = vmatpush1.msra.mxu0 0.0
    %1483 = vmatprep.subr.mxu0 0.0
    %1484 = vmatpush1.msra.mxu0 0.0
    %1485 = vmatprep.mubr.f32.mxu0 0.0
    %1486 = vmatmul.mubr.f32.gmra.mrb[0].mxu0 %v290
    %v1487 = vpop.f32.mrb[0].mxu0
    %v1488 = vadd.f32 0.0, %v1487
    %v1489 = vpop.f32.mrb[0].mxu0
    %1490 = vmatprep.mubr.f32.mxu0 0.0
    %1491 = vmatmul.mubr.f32.gmra.mrb[0].mxu0 %v293
    %v1492 = vpop.f32.mrb[0].mxu0
    %v1493 = vadd.f32 0.0, %v1492
    %v1494 = vpop.f32.mrb[0].mxu0
    %1495 = vmatprep.mubr.f32.mxu0 0.0
    %1496 = vmatmul.mubr.f32.gmra.mrb[0].mxu0 %v296
    %v1497 = vpop.f32.mrb[0].mxu0
    %v1498 = vadd.f32 0.0, %v1497
    %v1499 = vpop.f32.mrb[0].mxu0
    %1500 = vdwg.mxu0
    %v1502 = vsel %vm378, %v1488, 0
    %v1505 = vsel %vm378, %v1493, 0
    %v1508 = vsel %vm378, %v1498, 0
    %1510 = vmatprep.subr.mxu0 0.0
    %1511 = vmatpush1.msra.mxu0 %v59
    %1512 = vmatprep.subr.mxu0 0.0
    %1513 = vmatpush1.msra.mxu0 %v60
    %1514 = vmatprep.subr.mxu0 0.0
    %1515 = vmatpush1.msra.mxu0 %v61
    %1516 = vmatprep.subr.mxu0 0.0
    %1517 = vmatpush1.msra.mxu0 %v62
    %1518 = vmatprep.subr.mxu0 0.0
    %1519 = vmatpush1.msra.mxu0 %v63
    %1520 = vmatprep.subr.mxu0 0.0
    %1521 = vmatpush1.msra.mxu0 %v64
    %1522 = vmatprep.subr.mxu0 0.0
    %1523 = vmatpush1.msra.mxu0 %v65
    %1524 = vmatprep.subr.mxu0 0.0
    %1525 = vmatpush1.msra.mxu0 %v66
    %1526 = vmatprep.subr.mxu0 0.0
    %1527 = vmatpush1.msra.mxu0 0.0
    %1528 = vmatprep.subr.mxu0 0.0
    %1529 = vmatpush1.msra.mxu0 0.0
    %1530 = vmatprep.subr.mxu0 0.0
    %1531 = vmatpush1.msra.mxu0 0.0
    %1532 = vmatprep.subr.mxu0 0.0
    %1533 = vmatpush1.msra.mxu0 0.0
    %1534 = vmatprep.subr.mxu0 0.0
    %1535 = vmatpush1.msra.mxu0 0.0
    %1536 = vmatprep.subr.mxu0 0.0
    %1537 = vmatpush1.msra.mxu0 0.0
    %1538 = vmatprep.subr.mxu0 0.0
    %1539 = vmatpush1.msra.mxu0 0.0
    %1540 = vmatprep.subr.mxu0 0.0
    %1541 = vmatpush1.msra.mxu0 0.0
    %1542 = vmatprep.subr.mxu0 0.0
    %1543 = vmatpush1.msra.mxu0 0.0
    %1544 = vmatprep.subr.mxu0 0.0
    %1545 = vmatpush1.msra.mxu0 0.0
    %1546 = vmatprep.subr.mxu0 0.0
    %1547 = vmatpush1.msra.mxu0 0.0
    %1548 = vmatprep.subr.mxu0 0.0
    %1549 = vmatpush1.msra.mxu0 0.0
    %1550 = vmatprep.subr.mxu0 0.0
    %1551 = vmatpush1.msra.mxu0 0.0
    %1552 = vmatprep.subr.mxu0 0.0
    %1553 = vmatpush1.msra.mxu0 0.0
    %1554 = vmatprep.subr.mxu0 0.0
    %1555 = vmatpush1.msra.mxu0 0.0
    %1556 = vmatprep.subr.mxu0 0.0
    %1557 = vmatpush1.msra.mxu0 0.0
    %1558 = vmatprep.subr.mxu0 0.0
    %1559 = vmatpush1.msra.mxu0 0.0
    %1560 = vmatprep.subr.mxu0 0.0
    %1561 = vmatpush1.msra.mxu0 0.0
    %1562 = vmatprep.subr.mxu0 0.0
    %1563 = vmatpush1.msra.mxu0 0.0
    %1564 = vmatprep.subr.mxu0 0.0
    %1565 = vmatpush1.msra.mxu0 0.0
    %1566 = vmatprep.subr.mxu0 0.0
    %1567 = vmatpush1.msra.mxu0 0.0
    %1568 = vmatprep.subr.mxu0 0.0
    %1569 = vmatpush1.msra.mxu0 0.0
    %1570 = vmatprep.subr.mxu0 0.0
    %1571 = vmatpush1.msra.mxu0 0.0
    %1572 = vmatprep.subr.mxu0 0.0
    %1573 = vmatpush1.msra.mxu0 0.0
    %1574 = vmatprep.mubr.f32.mxu0 0.0
    %1575 = vmatmul.mubr.f32.gmra.mrb[0].mxu0 %v1502
    %v1576 = vpop.f32.mrb[0].mxu0
    %v1577 = vadd.f32 0.0, %v1576
    %v1578 = vpop.f32.mrb[0].mxu0
    %1579 = vmatprep.mubr.f32.mxu0 0.0
    %1580 = vmatmul.mubr.f32.gmra.mrb[0].mxu0 %v1505
    %v1581 = vpop.f32.mrb[0].mxu0
    %v1582 = vadd.f32 0.0, %v1581
    %v1583 = vpop.f32.mrb[0].mxu0
    %1584 = vmatprep.mubr.f32.mxu0 0.0
    %1585 = vmatmul.mubr.f32.gmra.mrb[0].mxu0 %v1508
    %v1586 = vpop.f32.mrb[0].mxu0
    %v1587 = vadd.f32 0.0, %v1586
    %v1588 = vpop.f32.mrb[0].mxu0
    %1589 = vdwg.mxu0
    %1590 = vmatprep.subr.mxu0 0.0
    %1591 = vmatpush1.msra.mxu0 %v55
    %1592 = vmatprep.subr.mxu0 0.0
    %1593 = vmatpush1.msra.mxu0 %v56
    %1594 = vmatprep.subr.mxu0 0.0
    %1595 = vmatpush1.msra.mxu0 %v57
    %1596 = vmatprep.subr.mxu0 0.0
    %1597 = vmatpush1.msra.mxu0 %v58
    %1598 = vmatprep.subr.mxu0 0.0
    %1599 = vmatpush1.msra.mxu0 0.0
    %1600 = vmatprep.subr.mxu0 0.0
    %1601 = vmatpush1.msra.mxu0 0.0
    %1602 = vmatprep.subr.mxu0 0.0
    %1603 = vmatpush1.msra.mxu0 0.0
    %1604 = vmatprep.subr.mxu0 0.0
    %1605 = vmatpush1.msra.mxu0 0.0
    %1606 = vmatprep.subr.mxu0 0.0
    %1607 = vmatpush1.msra.mxu0 0.0
    %1608 = vmatprep.subr.mxu0 0.0
    %1609 = vmatpush1.msra.mxu0 0.0
    %1610 = vmatprep.subr.mxu0 0.0
    %1611 = vmatpush1.msra.mxu0 0.0
    %1612 = vmatprep.subr.mxu0 0.0
    %1613 = vmatpush1.msra.mxu0 0.0
    %1614 = vmatprep.subr.mxu0 0.0
    %1615 = vmatpush1.msra.mxu0 0.0
    %1616 = vmatprep.subr.mxu0 0.0
    %1617 = vmatpush1.msra.mxu0 0.0
    %1618 = vmatprep.subr.mxu0 0.0
    %1619 = vmatpush1.msra.mxu0 0.0
    %1620 = vmatprep.subr.mxu0 0.0
    %1621 = vmatpush1.msra.mxu0 0.0
    %1622 = vmatprep.subr.mxu0 0.0
    %1623 = vmatpush1.msra.mxu0 0.0
    %1624 = vmatprep.subr.mxu0 0.0
    %1625 = vmatpush1.msra.mxu0 0.0
    %1626 = vmatprep.subr.mxu0 0.0
    %1627 = vmatpush1.msra.mxu0 0.0
    %1628 = vmatprep.subr.mxu0 0.0
    %1629 = vmatpush1.msra.mxu0 0.0
    %1630 = vmatprep.subr.mxu0 0.0
    %1631 = vmatpush1.msra.mxu0 0.0
    %1632 = vmatprep.subr.mxu0 0.0
    %1633 = vmatpush1.msra.mxu0 0.0
    %1634 = vmatprep.subr.mxu0 0.0
    %1635 = vmatpush1.msra.mxu0 0.0
    %1636 = vmatprep.subr.mxu0 0.0
    %1637 = vmatpush1.msra.mxu0 0.0
    %1638 = vmatprep.subr.mxu0 0.0
    %1639 = vmatpush1.msra.mxu0 0.0
    %1640 = vmatprep.subr.mxu0 0.0
    %1641 = vmatpush1.msra.mxu0 0.0
    %1642 = vmatprep.subr.mxu0 0.0
    %1643 = vmatpush1.msra.mxu0 0.0
    %1644 = vmatprep.subr.mxu0 0.0
    %1645 = vmatpush1.msra.mxu0 0.0
    %1646 = vmatprep.subr.mxu0 0.0
    %1647 = vmatpush1.msra.mxu0 0.0
    %1648 = vmatprep.subr.mxu0 0.0
    %1649 = vmatpush1.msra.mxu0 0.0
    %1650 = vmatprep.subr.mxu0 0.0
    %1651 = vmatpush1.msra.mxu0 0.0
    %1652 = vmatprep.subr.mxu0 0.0
    %1653 = vmatpush1.msra.mxu0 0.0
    %1654 = vmatprep.mubr.f32.mxu0 0.0
    %1655 = vmatmul.mubr.f32.gmra.mrb[0].mxu0 %v1226
    %v1656 = vpop.f32.mrb[0].mxu0
    %v1657 = vadd.f32 %v1577, %v1656
    %v1658 = vpop.f32.mrb[0].mxu0
    %1659 = vmatprep.mubr.f32.mxu0 0.0
    %1660 = vmatmul.mubr.f32.gmra.mrb[0].mxu0 %v1229
    %v1661 = vpop.f32.mrb[0].mxu0
    %v1662 = vadd.f32 %v1582, %v1661
    %v1663 = vpop.f32.mrb[0].mxu0
    %1664 = vmatprep.mubr.f32.mxu0 0.0
    %1665 = vmatmul.mubr.f32.gmra.mrb[0].mxu0 %v1232
    %v1666 = vpop.f32.mrb[0].mxu0
    %v1667 = vadd.f32 %v1587, %v1666
    %v1668 = vpop.f32.mrb[0].mxu0
    %1669 = vdwg.mxu0
    %v1670 = vadd.f32 %v1657, %v552
    %v1671 = vadd.f32 %v1662, %v552
    %v1672 = vadd.f32 %v1667, %v552
    %vm1673 = vcmp.ge.f32.partialorder %v1670, 0.0
    %vm1674 = vcmp.ge.f32.partialorder %v1671, 0.0
    %vm1675 = vcmp.ge.f32.partialorder %v1672, 0.0
    %v1676 = vmul.f32 %v1670, 0.01
    %v1677 = vmul.f32 %v1671, 0.01
    %v1678 = vmul.f32 %v1672, 0.01
    %v1679 = vsel %vm1673, %v1670, %v1676
    %v1680 = vsel %vm1674, %v1671, %v1677
    %v1681 = vsel %vm1675, %v1672, %v1678
    %v1683 = vsel %vm85, %v1679, 0
    %v1686 = vsel %vm85, %v1680, 0
    %v1689 = vsel %vm85, %v1681, 0
    %1691 = vmatprep.subr.mxu0 0.0
    %1692 = vmatpush1.msra.mxu0 %v68
    %1693 = vmatprep.subr.mxu0 0.0
    %1694 = vmatpush1.msra.mxu0 %v69
    %1695 = vmatprep.subr.mxu0 0.0
    %1696 = vmatpush1.msra.mxu0 %v70
    %1697 = vmatprep.subr.mxu0 0.0
    %1698 = vmatpush1.msra.mxu0 %v71
    %1699 = vmatprep.subr.mxu0 0.0
    %1700 = vmatpush1.msra.mxu0 0.0
    %1701 = vmatprep.subr.mxu0 0.0
    %1702 = vmatpush1.msra.mxu0 0.0
    %1703 = vmatprep.subr.mxu0 0.0
    %1704 = vmatpush1.msra.mxu0 0.0
    %1705 = vmatprep.subr.mxu0 0.0
    %1706 = vmatpush1.msra.mxu0 0.0
    %1707 = vmatprep.subr.mxu0 0.0
    %1708 = vmatpush1.msra.mxu0 0.0
    %1709 = vmatprep.subr.mxu0 0.0
    %1710 = vmatpush1.msra.mxu0 0.0
    %1711 = vmatprep.subr.mxu0 0.0
    %1712 = vmatpush1.msra.mxu0 0.0
    %1713 = vmatprep.subr.mxu0 0.0
    %1714 = vmatpush1.msra.mxu0 0.0
    %1715 = vmatprep.subr.mxu0 0.0
    %1716 = vmatpush1.msra.mxu0 0.0
    %1717 = vmatprep.subr.mxu0 0.0
    %1718 = vmatpush1.msra.mxu0 0.0
    %1719 = vmatprep.subr.mxu0 0.0
    %1720 = vmatpush1.msra.mxu0 0.0
    %1721 = vmatprep.subr.mxu0 0.0
    %1722 = vmatpush1.msra.mxu0 0.0
    %1723 = vmatprep.subr.mxu0 0.0
    %1724 = vmatpush1.msra.mxu0 0.0
    %1725 = vmatprep.subr.mxu0 0.0
    %1726 = vmatpush1.msra.mxu0 0.0
    %1727 = vmatprep.subr.mxu0 0.0
    %1728 = vmatpush1.msra.mxu0 0.0
    %1729 = vmatprep.subr.mxu0 0.0
    %1730 = vmatpush1.msra.mxu0 0.0
    %1731 = vmatprep.subr.mxu0 0.0
    %1732 = vmatpush1.msra.mxu0 0.0
    %1733 = vmatprep.subr.mxu0 0.0
    %1734 = vmatpush1.msra.mxu0 0.0
    %1735 = vmatprep.subr.mxu0 0.0
    %1736 = vmatpush1.msra.mxu0 0.0
    %1737 = vmatprep.subr.mxu0 0.0
    %1738 = vmatpush1.msra.mxu0 0.0
    %1739 = vmatprep.subr.mxu0 0.0
    %1740 = vmatpush1.msra.mxu0 0.0
    %1741 = vmatprep.subr.mxu0 0.0
    %1742 = vmatpush1.msra.mxu0 0.0
    %1743 = vmatprep.subr.mxu0 0.0
    %1744 = vmatpush1.msra.mxu0 0.0
    %1745 = vmatprep.subr.mxu0 0.0
    %1746 = vmatpush1.msra.mxu0 0.0
    %1747 = vmatprep.subr.mxu0 0.0
    %1748 = vmatpush1.msra.mxu0 0.0
    %1749 = vmatprep.subr.mxu0 0.0
    %1750 = vmatpush1.msra.mxu0 0.0
    %1751 = vmatprep.subr.mxu0 0.0
    %1752 = vmatpush1.msra.mxu0 0.0
    %1753 = vmatprep.subr.mxu0 0.0
    %1754 = vmatpush1.msra.mxu0 0.0
    %1755 = vmatprep.mubr.f32.mxu0 0.0
    %1756 = vmatmul.mubr.f32.gmra.mrb[0].mxu0 %v1683
    %v1757 = vpop.f32.mrb[0].mxu0
    %v1758 = vadd.f32 %v570, %v1757
    %v1759 = vpop.f32.mrb[0].mxu0
    %1760 = vmatprep.mubr.f32.mxu0 0.0
    %1761 = vmatmul.mubr.f32.gmra.mrb[0].mxu0 %v1686
    %v1762 = vpop.f32.mrb[0].mxu0
    %v1763 = vpop.f32.mrb[0].mxu0
    %1764 = vmatprep.mubr.f32.mxu0 0.0
    %1765 = vmatmul.mubr.f32.gmra.mrb[0].mxu0 %v1689
    %v1766 = vpop.f32.mrb[0].mxu0
    %v1767 = vpop.f32.mrb[0].mxu0
    %1768 = vdwg.mxu0
    %vm1769 = vcmp.ge.f32.partialorder %v1758, 0.0
    %v1770 = vmul.f32 %v1758, 0.01
    %v1771 = vsel %vm1769, %v1758, %v1770
    %v1772 = vld [vmem:[%s11] sm:$0xff]
    %v1773 = vld [vmem:[%s11 + $0x8] sm:$0xff]
    %v1774 = vld [vmem:[%s11 + $0x10] sm:$0xff]
    %v1775 = vld [vmem:[%s11 + $0x18] sm:$0xff]
    %v1776 = vld [vmem:[%s12] sm:$0x1]
    %v1778 = vlaneseq
    %v1779 = vshrl.u32 %v1778, 7
    %v1780 = vsub.s32 0, %v1779
    %v1781 = vrot.slane %v1776, %v1780
    %v1784 = vsel %vm85, %v1771, 0
    %1786 = vmatprep.subr.mxu0 0.0
    %1787 = vmatpush1.msra.mxu0 %v1772
    %1788 = vmatprep.subr.mxu0 0.0
    %1789 = vmatpush1.msra.mxu0 %v1773
    %1790 = vmatprep.subr.mxu0 0.0
    %1791 = vmatpush1.msra.mxu0 %v1774
    %1792 = vmatprep.subr.mxu0 0.0
    %1793 = vmatpush1.msra.mxu0 %v1775
    %1794 = vmatprep.subr.mxu0 0.0
    %1795 = vmatpush1.msra.mxu0 0.0
    %1796 = vmatprep.subr.mxu0 0.0
    %1797 = vmatpush1.msra.mxu0 0.0
    %1798 = vmatprep.subr.mxu0 0.0
    %1799 = vmatpush1.msra.mxu0 0.0
    %1800 = vmatprep.subr.mxu0 0.0
    %1801 = vmatpush1.msra.mxu0 0.0
    %1802 = vmatprep.subr.mxu0 0.0
    %1803 = vmatpush1.msra.mxu0 0.0
    %1804 = vmatprep.subr.mxu0 0.0
    %1805 = vmatpush1.msra.mxu0 0.0
    %1806 = vmatprep.subr.mxu0 0.0
    %1807 = vmatpush1.msra.mxu0 0.0
    %1808 = vmatprep.subr.mxu0 0.0
    %1809 = vmatpush1.msra.mxu0 0.0
    %1810 = vmatprep.subr.mxu0 0.0
    %1811 = vmatpush1.msra.mxu0 0.0
    %1812 = vmatprep.subr.mxu0 0.0
    %1813 = vmatpush1.msra.mxu0 0.0
    %1814 = vmatprep.subr.mxu0 0.0
    %1815 = vmatpush1.msra.mxu0 0.0
    %1816 = vmatprep.subr.mxu0 0.0
    %1817 = vmatpush1.msra.mxu0 0.0
    %1818 = vmatprep.subr.mxu0 0.0
    %1819 = vmatpush1.msra.mxu0 0.0
    %1820 = vmatprep.subr.mxu0 0.0
    %1821 = vmatpush1.msra.mxu0 0.0
    %1822 = vmatprep.subr.mxu0 0.0
    %1823 = vmatpush1.msra.mxu0 0.0
    %1824 = vmatprep.subr.mxu0 0.0
    %1825 = vmatpush1.msra.mxu0 0.0
    %1826 = vmatprep.subr.mxu0 0.0
    %1827 = vmatpush1.msra.mxu0 0.0
    %1828 = vmatprep.subr.mxu0 0.0
    %1829 = vmatpush1.msra.mxu0 0.0
    %1830 = vmatprep.subr.mxu0 0.0
    %1831 = vmatpush1.msra.mxu0 0.0
    %1832 = vmatprep.subr.mxu0 0.0
    %1833 = vmatpush1.msra.mxu0 0.0
    %1834 = vmatprep.subr.mxu0 0.0
    %1835 = vmatpush1.msra.mxu0 0.0
    %1836 = vmatprep.subr.mxu0 0.0
    %1837 = vmatpush1.msra.mxu0 0.0
    %1838 = vmatprep.subr.mxu0 0.0
    %1839 = vmatpush1.msra.mxu0 0.0
    %1840 = vmatprep.subr.mxu0 0.0
    %1841 = vmatpush1.msra.mxu0 0.0
    %1842 = vmatprep.subr.mxu0 0.0
    %1843 = vmatpush1.msra.mxu0 0.0
    %1844 = vmatprep.subr.mxu0 0.0
    %1845 = vmatpush1.msra.mxu0 0.0
    %1846 = vmatprep.subr.mxu0 0.0
    %1847 = vmatpush1.msra.mxu0 0.0
    %1848 = vmatprep.subr.mxu0 0.0
    %1849 = vmatpush1.msra.mxu0 0.0
    %1850 = vmatprep.mubr.f32.mxu0 0.0
    %1851 = vmatmul.mubr.f32.gmra.mrb[0].mxu0 %v1784
    %v1852 = vpop.f32.mrb[0].mxu0
    %v1853 = vadd.f32 %v1781, %v1852
    %v1854 = vpop.f32.mrb[0].mxu0
    %1855 = vdwg.mxu0
    %v1856 = vtanh.pop %v1853
    %v1857 = vmul.f32 %v1856, %v1856
    %v1858 = vsel %vm85, %v1857, 0.0
    %1859 = vadd.xlane.f32.xlu0 %v1858
    %v1860 = vpop.xlane.xlu0 %1859
    %v1861 = vrot.slane %v1860, 4
    %v1862 = vadd.f32 %v1860, %v1861
    %v1863 = vrot.slane %v1862, 2
    %v1864 = vadd.f32 %v1862, %v1863
    %v1865 = vrot.slane %v1864, 1
    %v1866 = vadd.f32 %v1864, %v1865
    %s1867 = vtos %v1866
    %p1868 = scmp.gt.f32.partialorder %s1867, 1.0
    %v1869 = vstv %s1867
    %v1870 = vrsqrt.pop %v1869
    %s1871 = vtos %v1870
    %s1872 = scalar_select %p1868, %s1871, 1.0
    %v1873 = vstv %s1872
    %v1874 = vmul.f32 %v1856, %v1873
    %1875 = vst.msk [vmem:[#allocation2] sm:$0xff] %vm85, %v1874
    // Predicated region
    $region54: #{fdgnn_forward.1} parent=1 // pred_check
      _
    $region55: #{fdgnn_forward.1} parent=1 // pred_check_branch
      %1877 = sbr.rel (0) target = $region57
    $region56: #{fdgnn_forward.1} parent=1 // pred_region
      %s1879 = ssub.s32 128, 128
      %1880 = vsyncadd [#allocation3], %s1879
      %s1882 = sshll.u32 [#allocation2], 4
      %s1883 = int_to_ptr.vmem [resolvable:$true] %s1882
      %1885 = dma.vmem_to_hbm [thread:$0]  %s1883, 128, %s13, [#allocation3]
    $region57: #{fdgnn_forward.1} parent=1 // pred_fallthru
      _
    // Predicated region
    $region58: #{fdgnn_forward.1} parent=1 // pred_check
      _
    $region59: #{fdgnn_forward.1} parent=1 // pred_check_branch
      %1887 = sbr.rel (0) target = $region61
    $region60: #{fdgnn_forward.1} parent=1 // pred_region
      %1888 = dma.done [#allocation3], 128
    $region61: #{fdgnn_forward.1} parent=1 // pred_fallthru
      _
    %1889 = vsyncpa [#allocation3], 1

</llo_original>
